<compile_context>
chip_gen: v7x
topology: tpu7x:2x2x1
jax: 0.10.0
libtpu: 0.0.40
codegen_flags: <defaults>
</compile_context>

<pallas_src>
import functools
import math

import jax
import jax.numpy as jnp
from jax import lax
from jax.experimental import pallas as pl
from jax.experimental.pallas import tpu as pltpu


# ----------------------------- small static helpers -----------------------------

def _pow_int(z, n):
    """z**n for static integer n >= 1 via repeated squaring (VPU multiplies only)."""
    acc = None
    base = z
    n = int(n)
    while n > 0:
        if n & 1:
            acc = base if acc is None else acc * base
        n >>= 1
        if n:
            base = base * base
    return acc


def _elem_pow(z, p):
    """Elementwise z**p.  Integer p -> repeated squaring; otherwise EUP fallback."""
    pf = float(p)
    pi = int(pf)
    if float(pi) == pf and 1 <= pi <= 64:
        return _pow_int(z, pi)
    return jnp.power(z, pf)            # non-integer exponent only (EUP exp/log path)


def _root(s, p):
    """Elementwise s**(1/p) on the already-reduced (tile_b, tile_out) result."""
    pf = float(p)
    pi = int(pf)
    if float(pi) == pf and pi >= 1 and (pi & (pi - 1)) == 0:
        r = s
        for _ in range(pi.bit_length() - 1):       # p = 2^k -> k chained sqrts (EUP)
            r = jnp.sqrt(r)
        return r
    return jnp.power(s, 1.0 / pf)


def _divisors_desc(n):
    out = set()
    i = 1
    while i * i <= n:
        if n % i == 0:
            out.add(i)
            out.add(n // i)
        i += 1
    return sorted(out, reverse=True)


def _pick_tile(n, target, quantum):
    """Largest divisor of n that is <= target and (a multiple of quantum or == n)."""
    for d in range(min(n, target), 0, -1):
        if n % d == 0 and (d % quantum == 0 or d == n):
            return d
    return n


def _vmem_budget_bytes():
    """Generation-aware VMEM budget (~75% of physical per-core VMEM)."""
    get_info = getattr(pltpu, "get_tpu_info", None)
    cap = None
    if get_info is not None:
        try:
            cap = getattr(get_info(), "vmem_capacity_bytes", None)
        except Exception:
            cap = None
    if not cap:
        return 48 << 20                # conservative fallback: fits v7x's 64 MiB/TC
    return int(cap) * 3 // 4           # leave headroom for compiler scratch / buffers


# --------------------------------- kernels ---------------------------------------

def _norm_dist_kernel(xt_ref, wt_ref, b_ref, o_ref, m_ref, s_ref, *, p, even, kc):
    # xt_ref: (tile_k, tile_b)   x^T block (reduction axis leading, batch on lanes)
    # wt_ref: (tile_k, tile_out) weight^T block (outputs on lanes)
    # b_ref : (1, tile_out)
    # o_ref : (tile_b, tile_out)
    # m_ref : (tile_b, tile_out) f32 scratch -- running inf-norm (m^2 for even p)
    # s_ref : (tile_b, tile_out) f32 scratch -- running sum of (scaled diff)^p
    k_idx = pl.program_id(2)
    nk = pl.num_programs(2)
    tk = xt_ref.shape[0]
    n_chunks = tk // kc
    q = (int(p) // 2) if even else p   # exponent applied to slice_val (d^2 when even)

    @pl.when(k_idx == 0)
    def _():
        m_ref[...] = jnp.zeros_like(m_ref)
        s_ref[...] = jnp.zeros_like(s_ref)

    def slice_val(idx):
        # One reduction slice folded straight into a (tile_b, tile_out) tile: the live
        # set stays at a couple of tiles (no (kc, tb, to) materialization / spills).
        xk = xt_ref[pl.ds(idx, 1), :].astype(jnp.float32)      # (1, tb)
        wk = wt_ref[pl.ds(idx, 1), :].astype(jnp.float32)      # (1, to)
        d = (xk[:, :, None] - wk[:, None, :])[0]               # (tb, to)
        return d * d if even else jnp.abs(d)

    def run_chunks(body, init):
        if n_chunks <= 4:              # modest static unroll for short trip counts
            val = init
            for c in range(n_chunks):
                val = body(c, val)
            return val
        return lax.fori_loop(0, n_chunks, body, init)

    # ---- sweep 1: running inf-norm, pure VPU max folds (kc slices unrolled) ----
    def max_chunk(c, m):
        base = c * kc
        if not isinstance(base, int):
            base = pl.multiple_of(base, kc)
        for j in range(kc):
            m = jnp.maximum(m, slice_val(base + j))
        return m

    m_old = m_ref[...]
    m_new = run_chunks(max_chunk, m_old)

    # one exact reciprocal per grid step / output element; guard the x == w case.
    # NOTE: for 0 < m < 1e-30 the inner scale and the final multiply by m are slightly
    # inconsistent (biased toward 0); harmless for normal data, exact-zero rows are ok.
    inv = 1.0 / jnp.maximum(m_new, 1e-30)

    # carry the partial sum forward in units of the *new* inf-norm (online rescale
    # across reduction grid steps; m_old <= m_new so the ratio is in [0, 1]).
    s0 = s_ref[...] * _elem_pow(m_old * inv, q)

    # ---- sweep 2: sum_k (scaled diff)^p via repeated squaring (VPU only) ----
    def sum_chunk(c, s):
        base = c * kc
        if not isinstance(base, int):
            base = pl.multiple_of(base, kc)
        for j in range(kc):
            s = s + _elem_pow(slice_val(base + j) * inv, q)
        return s

    s_new = run_chunks(sum_chunk, s0)

    m_ref[...] = m_new
    s_ref[...] = s_new

    @pl.when(k_idx == nk - 1)
    def _():
        root = _root(s_new, p)                          # EUP, reduced result only
        scale = jnp.sqrt(m_new) if even else m_new      # undo the d^2 tracking
        y = scale * root + b_ref[...].astype(jnp.float32)
        o_ref[...] = y.astype(o_ref.dtype)


def _norm_dist_p2_kernel(x_ref, wt_ref, x2_ref, w2_ref, b_ref, o_ref):
    # ||x - w||^2 = ||x||^2 - 2 x.w + ||w||^2 ; the squared norms are precomputed in
    # the wrapper (no per-tile XLU reductions).  Precision.HIGH (bf16_3x) keeps near-
    # f32 accuracy at ~2x the speed of HIGHEST's full f32 emulation.
    # TODO(synk): this form loses precision when x ~= w (catastrophic cancellation);
    # route tiny-distance workloads through the general path if that matters.
    xw = jnp.dot(x_ref[...], wt_ref[...], preferred_element_type=jnp.float32,
                 precision=lax.Precision.HIGH)
    sq = jnp.maximum(x2_ref[...] - 2.0 * xw + w2_ref[...], 0.0)
    o_ref[...] = (jnp.sqrt(sq) + b_ref[...].astype(jnp.float32)).astype(o_ref.dtype)


# --------------------------------- wrapper ----------------------------------------

def norm_dist_forward(x, weight=None, bias=None, *, p, weight_t=None,
                      tile_b=None, tile_out=None, tile_k=None, k_chunk=8,
                      use_mxu_p2=True):
    """Pallas forward for NormDist (group=1): returns (B, out_features).

    Pass `weight_t` (= weight.T, shape (in_features, out_features)) pre-transposed
    when calling repeatedly so the per-call HBM transpose stays off the hot path.
    """
    B, d_in = x.shape
    if weight_t is None:
        assert weight is not None, "need weight or weight_t"
        weight_t = weight.T
    d_in_w, d_out = weight_t.shape
    assert d_in_w == d_in
    bias2 = (jnp.zeros((d_out,), x.dtype) if bias is None else bias).reshape(1, d_out)

    pf = float(p)
    assert pf > 1.0 and not math.isinf(pf), "only finite p > 1 is supported"
    # TODO(synk): p == inf (inf_dist) forward / inf_dist_bound interval propagation,
    # group > 1, and MeanNorm (mean_normalize=True) are not implemented; the default
    # NormDist forward (lower=upper=None, group=1) does not exercise them.
    even = pf.is_integer() and int(pf) % 2 == 0

    itemsize = jnp.dtype(x.dtype).itemsize
    budget = _vmem_budget_bytes()

    # ------------------------------ p == 2: MXU path ------------------------------
    if use_mxu_p2 and pf == 2.0:
        tb = tile_b if tile_b is not None else _pick_tile(B, 512, 8)
        to = tile_out if tile_out is not None else _pick_tile(d_out, 256, 128)

        def est_p2(tb_, to_):
            return (2 * itemsize * (tb_ * d_in + d_in * to_)
                    + 2 * 4 * (tb_ + 2 * to_)
                    + 2 * itemsize * tb_ * to_ + 8 * tb_ * to_)

        while est_p2(tb, to) > budget * 8 // 10:
            if tb % 16 == 0:
                tb //= 2
            elif to % 256 == 0:
                to //= 2
            else:
                break   # TODO(synk): add a d_in reduction grid axis to the p=2 path
        n_b, n_o = B // tb, d_out // to
        if n_b * n_o < 2:                          # keep both v7x TensorCores busy
            if to % 256 == 0:
                to //= 2
            elif tb % 16 == 0:
                tb //= 2
            n_b, n_o = B // tb, d_out // to
        assert B % tb == 0 and d_out % to == 0

        x2 = jnp.sum(jnp.square(x.astype(jnp.float32)), axis=1, keepdims=True)
        w2 = jnp.sum(jnp.square(weight_t.astype(jnp.float32)), axis=0, keepdims=True)

        vmem_limit = int(min(budget, max(32 << 20, 2 * est_p2(tb, to))))
        cost = pl.CostEstimate(
            flops=int(2 * B * d_out * d_in + 4 * B * d_out),
            transcendentals=int(B * d_out),
            bytes_accessed=int(itemsize * (d_in * d_out + n_o * B * d_in
                                           + B * d_out + d_out) + 4 * (B + d_out)))
        # Batch axis innermost: each weight / ||w||^2 / bias tile is streamed once in
        # total (weight is the larger operand), x tiles are re-streamed per out tile.
        return pl.pallas_call(
            _norm_dist_p2_kernel,
            out_shape=jax.ShapeDtypeStruct((B, d_out), x.dtype),
            grid_spec=pltpu.PrefetchScalarGridSpec(
                num_scalar_prefetch=0,
                grid=(n_o, n_b),
                in_specs=[
                    pl.BlockSpec((tb, d_in), lambda j, i: (i, 0)),       # x
                    pl.BlockSpec((d_in, to), lambda j, i: (0, j)),       # weight^T
                    pl.BlockSpec((tb, 1), lambda j, i: (i, 0)),          # ||x||^2
                    pl.BlockSpec((1, to), lambda j, i: (0, j)),          # ||w||^2
                    pl.BlockSpec((1, to), lambda j, i: (0, j)),          # bias
                ],
                out_specs=pl.BlockSpec((tb, to), lambda j, i: (i, j)),
            ),
            compiler_params=pltpu.CompilerParams(
                dimension_semantics=("parallel", "parallel"),
                vmem_limit_bytes=vmem_limit),
            cost_estimate=cost,
        )(x, weight_t, x2, w2, bias2)

    # ------------------------- general p: lane-dense VPU path ----------------------
    tb = tile_b if tile_b is not None else _pick_tile(B, 128, 8)
    to = tile_out if tile_out is not None else _pick_tile(d_out, 128, 128)
    n_b, n_o = B // tb, d_out // to
    if tile_b is None and tile_out is None and n_b * n_o < 2:
        if to % 256 == 0:
            to //= 2
        elif tb % 16 == 0:
            tb //= 2
        n_b, n_o = B // tb, d_out // to
    assert B % tb == 0 and d_out % to == 0

    def est_gen(tk_):
        # double-buffered input blocks + out + m/s scratch + working-register headroom
        return (2 * itemsize * (tk_ * tb + tk_ * to + to)
                + 2 * itemsize * tb * to + 2 * 4 * tb * to + 6 * 4 * tb * to)

    if tile_k is None:
        cands = [d for d in _divisors_desc(d_in) if d == d_in or d % 8 == 0] or [d_in]
        tile_k = cands[-1]
        for cand in cands:
            if est_gen(cand) <= budget * 8 // 10:
                tile_k = cand
                break
    assert d_in % tile_k == 0
    assert tile_k == d_in or tile_k % 8 == 0, "tile_k must divide d_in and be 8-aligned"

    kc = 1
    for c in range(min(int(k_chunk), tile_k), 0, -1):
        if tile_k % c == 0:
            kc = c
            break

    n_k = d_in // tile_k
    vmem_limit = int(min(budget, max(32 << 20, 2 * est_gen(tile_k))))
    cost = pl.CostEstimate(
        flops=int((10 if even else 12) * B * d_out * d_in),
        transcendentals=(int(B * d_out * (n_k + 3)) if pf.is_integer()
                         else int(B * d_out * (d_in + 3))),
        bytes_accessed=int(itemsize * (n_o * B * d_in + n_b * d_in * d_out
                                       + B * d_out + d_out)))

    x_t = x.T        # (d_in, B): reduction axis leading, batch on lanes (small array)

    return pl.pallas_call(
        functools.partial(_norm_dist_kernel, p=pf, even=even, kc=kc),
        out_shape=jax.ShapeDtypeStruct((B, d_out), x.dtype),
        grid_spec=pltpu.PrefetchScalarGridSpec(
            num_scalar_prefetch=0,
            grid=(n_b, n_o, n_k),
            in_specs=[
                pl.BlockSpec((tile_k, tb), lambda i, j, k: (k, i)),      # x^T
                pl.BlockSpec((tile_k, to), lambda i, j, k: (k, j)),      # weight^T
                pl.BlockSpec((1, to), lambda i, j, k: (0, j)),           # bias
            ],
            out_specs=pl.BlockSpec((tb, to), lambda i, j, k: (i, j)),
            scratch_shapes=[pltpu.VMEM((tb, to), jnp.float32),
                            pltpu.VMEM((tb, to), jnp.float32)],
        ),
        compiler_params=pltpu.CompilerParams(
            dimension_semantics=("parallel", "parallel", "arbitrary"),
            vmem_limit_bytes=vmem_limit),
        cost_estimate=cost,
    )(x_t, weight_t, bias2)


# ------------------------------ params / reference --------------------------------

def init_norm_dist_params(key, in_features, out_features, identity_init=True):
    """Mirror NormDist.__init__: randn weights (+ identity_init), zero bias."""
    w = jax.random.normal(key, (out_features, in_features), dtype=jnp.float32)
    if identity_init and in_features <= out_features:
        rows = jnp.arange(out_features)
        cols = rows % in_features
        w = w.at[rows, cols].set(-10.0)
    b = jnp.zeros((out_features,), dtype=jnp.float32)
    return w, b


def _reference_forward(x, w, b, p):
    """Pure-JAX reference matching the PyTorch non-CUDA norm_dist path."""
    diff = jnp.abs(x[:, None, :] - w[None, :, :])
    ninf = jnp.max(diff, axis=-1, keepdims=True)
    safe = jnp.where(ninf > 0, ninf, 1.0)              # guard x row == w row
    y = jnp.power(jnp.sum(jnp.power(diff / safe, p), axis=-1), 1.0 / p) * ninf[..., 0]
    return y + b[None, :]


if __name__ == "__main__":
    # NormDist(in_features=32, out_features=256, p=8.0, bias=True)
    B, in_features, out_features = 8, 32, 256

    key = jax.random.PRNGKey(0)
    kx, kw = jax.random.split(key)
    x = jax.random.normal(kx, (B, in_features), dtype=jnp.float32)
    weight, bias = init_norm_dist_params(kw, in_features, out_features)
    w_t = jnp.asarray(weight.T)       # store pre-transposed, off the hot path

    # even-p (p=8) lane-dense VPU path (d^2 tracking, per-slice folds)
    out8 = jax.block_until_ready(norm_dist_forward(x, bias=bias, p=8.0, weight_t=w_t))
    ref8 = _reference_forward(x, weight, bias, 8.0)
    assert out8.shape == (B, out_features)
    assert jnp.allclose(out8, ref8, rtol=1e-5, atol=1e-5), "p=8 mismatch vs reference"

    # exercise the d_in reduction grid axis (online inf-norm rescale across k blocks)
    out8t = jax.block_until_ready(norm_dist_forward(x, weight, bias, p=8.0, tile_k=16))
    assert jnp.allclose(out8t, ref8, rtol=1e-5, atol=1e-5), "tiled-k mismatch"

    # odd-p (p=3) |d| path
    out3 = jax.block_until_ready(norm_dist_forward(x, weight, bias, p=3.0))
    ref3 = _reference_forward(x, weight, bias, 3.0)
    assert jnp.allclose(out3, ref3, rtol=1e-5, atol=1e-5), "p=3 mismatch vs reference"

    # p=2 MXU path
    out2 = jax.block_until_ready(norm_dist_forward(x, weight, bias, p=2.0))
    ref2 = _reference_forward(x, weight, bias, 2.0)
    assert jnp.allclose(out2, ref2, rtol=1e-4, atol=1e-4), "p=2 mismatch vs reference"

    print("KERNEL_OK")
</pallas_src>

<mosaic_0001>
module attributes {stable_mosaic.version = 11 : i64} {
  func.func @_norm_dist_kernel(%arg0: i32, %arg1: i32, %arg2: i32, %arg3: memref<32x8xf32, #tpu.memory_space<vmem>>, %arg4: memref<32x128xf32, #tpu.memory_space<vmem>>, %arg5: memref<1x128xf32, #tpu.memory_space<vmem>>, %arg6: memref<8x128xf32, #tpu.memory_space<vmem>>, %arg7: memref<8x128xf32, #tpu.memory_space<vmem>>, %arg8: memref<8x128xf32, #tpu.memory_space<vmem>>) attributes {dimension_semantics = [#tpu.dimension_semantics<parallel>, #tpu.dimension_semantics<parallel>, #tpu.dimension_semantics<arbitrary>], iteration_bounds = array<i64: 1, 2, 1>, scalar_prefetch = 0 : i64, scratch_operands = 2 : i64, tpu.core_type = #tpu.core_type<tc>, window_params = [{transform_indices = @transform_0, window_bounds = array<i64: 32, 8>}, {transform_indices = @transform_1, window_bounds = array<i64: 32, 128>}, {transform_indices = @transform_2, window_bounds = array<i64: 1, 128>}, {transform_indices = @transform_3, window_bounds = array<i64: 8, 128>}]} {
    %c0_i32 = arith.constant 0 : i32
    %0 = arith.cmpi eq, %arg2, %c0_i32 : i32
    %1 = arith.extui %0 : i1 to i32
    %c0_i32_0 = arith.constant 0 : i32
    %2 = arith.cmpi ne, %1, %c0_i32_0 : i32
    scf.if %2 {
      %cst_236 = arith.constant 0.000000e+00 : f32
      %754 = vector.broadcast %cst_236 : f32 to vector<8x128xf32>
      %c0_237 = arith.constant 0 : index
      %c0_238 = arith.constant 0 : index
      %755 = vector.load %arg7[%c0_237, %c0_238] : memref<8x128xf32, #tpu.memory_space<vmem>>, vector<8x128xf32>
      tpu.vector_store %arg7[%c0_237, %c0_238], %754 {strides = array<i32>} : memref<8x128xf32, #tpu.memory_space<vmem>>, vector<8x128xf32>,
      %cst_239 = arith.constant 0.000000e+00 : f32
      %756 = vector.broadcast %cst_239 : f32 to vector<8x128xf32>
      %c0_240 = arith.constant 0 : index
      %c0_241 = arith.constant 0 : index
      %757 = vector.load %arg8[%c0_240, %c0_241] : memref<8x128xf32, #tpu.memory_space<vmem>>, vector<8x128xf32>
      tpu.vector_store %arg8[%c0_240, %c0_241], %756 {strides = array<i32>} : memref<8x128xf32, #tpu.memory_space<vmem>>, vector<8x128xf32>,
    } else {
    }
    %c0 = arith.constant 0 : index
    %c0_1 = arith.constant 0 : index
    %3 = vector.load %arg7[%c0, %c0_1] : memref<8x128xf32, #tpu.memory_space<vmem>>, vector<8x128xf32>
    %c0_2 = arith.constant 0 : index
    %c0_3 = arith.constant 0 : index
    %4 = vector.load %arg3[%c0_2, %c0_3] : memref<32x8xf32, #tpu.memory_space<vmem>>, vector<1x8xf32>
    %c0_4 = arith.constant 0 : index
    %c0_5 = arith.constant 0 : index
    %5 = vector.load %arg4[%c0_4, %c0_5] : memref<32x128xf32, #tpu.memory_space<vmem>>, vector<1x128xf32>
    %6 = vector.shape_cast %4 : vector<1x8xf32> to vector<1x8x1xf32>
    %7 = vector.shape_cast %5 : vector<1x128xf32> to vector<1x1x128xf32>
    %8 = vector.broadcast %6 : vector<1x8x1xf32> to vector<1x8x128xf32>
    %9 = vector.broadcast %7 : vector<1x1x128xf32> to vector<1x8x128xf32>
    %10 = arith.subf %8, %9 : vector<1x8x128xf32>
    %11 = vector.shape_cast %10 : vector<1x8x128xf32> to vector<8x128xf32>
    %12 = arith.mulf %11, %11 : vector<8x128xf32>
    %13 = arith.maximumf %3, %12 : vector<8x128xf32>
    %c1 = arith.constant 1 : index
    %c0_6 = arith.constant 0 : index
    %14 = vector.load %arg3[%c1, %c0_6] : memref<32x8xf32, #tpu.memory_space<vmem>>, vector<1x8xf32>
    %c1_7 = arith.constant 1 : index
    %c0_8 = arith.constant 0 : index
    %15 = vector.load %arg4[%c1_7, %c0_8] : memref<32x128xf32, #tpu.memory_space<vmem>>, vector<1x128xf32>
    %16 = vector.shape_cast %14 : vector<1x8xf32> to vector<1x8x1xf32>
    %17 = vector.shape_cast %15 : vector<1x128xf32> to vector<1x1x128xf32>
    %18 = vector.broadcast %16 : vector<1x8x1xf32> to vector<1x8x128xf32>
    %19 = vector.broadcast %17 : vector<1x1x128xf32> to vector<1x8x128xf32>
    %20 = arith.subf %18, %19 : vector<1x8x128xf32>
    %21 = vector.shape_cast %20 : vector<1x8x128xf32> to vector<8x128xf32>
    %22 = arith.mulf %21, %21 : vector<8x128xf32>
    %23 = arith.maximumf %13, %22 : vector<8x128xf32>
    %c2 = arith.constant 2 : index
    %c0_9 = arith.constant 0 : index
    %24 = vector.load %arg3[%c2, %c0_9] : memref<32x8xf32, #tpu.memory_space<vmem>>, vector<1x8xf32>
    %c2_10 = arith.constant 2 : index
    %c0_11 = arith.constant 0 : index
    %25 = vector.load %arg4[%c2_10, %c0_11] : memref<32x128xf32, #tpu.memory_space<vmem>>, vector<1x128xf32>
    %26 = vector.shape_cast %24 : vector<1x8xf32> to vector<1x8x1xf32>
    %27 = vector.shape_cast %25 : vector<1x128xf32> to vector<1x1x128xf32>
    %28 = vector.broadcast %26 : vector<1x8x1xf32> to vector<1x8x128xf32>
    %29 = vector.broadcast %27 : vector<1x1x128xf32> to vector<1x8x128xf32>
    %30 = arith.subf %28, %29 : vector<1x8x128xf32>
    %31 = vector.shape_cast %30 : vector<1x8x128xf32> to vector<8x128xf32>
    %32 = arith.mulf %31, %31 : vector<8x128xf32>
    %33 = arith.maximumf %23, %32 : vector<8x128xf32>
    %c3 = arith.constant 3 : index
    %c0_12 = arith.constant 0 : index
    %34 = vector.load %arg3[%c3, %c0_12] : memref<32x8xf32, #tpu.memory_space<vmem>>, vector<1x8xf32>
    %c3_13 = arith.constant 3 : index
    %c0_14 = arith.constant 0 : index
    %35 = vector.load %arg4[%c3_13, %c0_14] : memref<32x128xf32, #tpu.memory_space<vmem>>, vector<1x128xf32>
    %36 = vector.shape_cast %34 : vector<1x8xf32> to vector<1x8x1xf32>
    %37 = vector.shape_cast %35 : vector<1x128xf32> to vector<1x1x128xf32>
    %38 = vector.broadcast %36 : vector<1x8x1xf32> to vector<1x8x128xf32>
    %39 = vector.broadcast %37 : vector<1x1x128xf32> to vector<1x8x128xf32>
    %40 = arith.subf %38, %39 : vector<1x8x128xf32>
    %41 = vector.shape_cast %40 : vector<1x8x128xf32> to vector<8x128xf32>
    %42 = arith.mulf %41, %41 : vector<8x128xf32>
    %43 = arith.maximumf %33, %42 : vector<8x128xf32>
    %c4 = arith.constant 4 : index
    %c0_15 = arith.constant 0 : index
    %44 = vector.load %arg3[%c4, %c0_15] : memref<32x8xf32, #tpu.memory_space<vmem>>, vector<1x8xf32>
    %c4_16 = arith.constant 4 : index
    %c0_17 = arith.constant 0 : index
    %45 = vector.load %arg4[%c4_16, %c0_17] : memref<32x128xf32, #tpu.memory_space<vmem>>, vector<1x128xf32>
    %46 = vector.shape_cast %44 : vector<1x8xf32> to vector<1x8x1xf32>
    %47 = vector.shape_cast %45 : vector<1x128xf32> to vector<1x1x128xf32>
    %48 = vector.broadcast %46 : vector<1x8x1xf32> to vector<1x8x128xf32>
    %49 = vector.broadcast %47 : vector<1x1x128xf32> to vector<1x8x128xf32>
    %50 = arith.subf %48, %49 : vector<1x8x128xf32>
    %51 = vector.shape_cast %50 : vector<1x8x128xf32> to vector<8x128xf32>
    %52 = arith.mulf %51, %51 : vector<8x128xf32>
    %53 = arith.maximumf %43, %52 : vector<8x128xf32>
    %c5 = arith.constant 5 : index
    %c0_18 = arith.constant 0 : index
    %54 = vector.load %arg3[%c5, %c0_18] : memref<32x8xf32, #tpu.memory_space<vmem>>, vector<1x8xf32>
    %c5_19 = arith.constant 5 : index
    %c0_20 = arith.constant 0 : index
    %55 = vector.load %arg4[%c5_19, %c0_20] : memref<32x128xf32, #tpu.memory_space<vmem>>, vector<1x128xf32>
    %56 = vector.shape_cast %54 : vector<1x8xf32> to vector<1x8x1xf32>
    %57 = vector.shape_cast %55 : vector<1x128xf32> to vector<1x1x128xf32>
    %58 = vector.broadcast %56 : vector<1x8x1xf32> to vector<1x8x128xf32>
    %59 = vector.broadcast %57 : vector<1x1x128xf32> to vector<1x8x128xf32>
    %60 = arith.subf %58, %59 : vector<1x8x128xf32>
    %61 = vector.shape_cast %60 : vector<1x8x128xf32> to vector<8x128xf32>
    %62 = arith.mulf %61, %61 : vector<8x128xf32>
    %63 = arith.maximumf %53, %62 : vector<8x128xf32>
    %c6 = arith.constant 6 : index
    %c0_21 = arith.constant 0 : index
    %64 = vector.load %arg3[%c6, %c0_21] : memref<32x8xf32, #tpu.memory_space<vmem>>, vector<1x8xf32>
    %c6_22 = arith.constant 6 : index
    %c0_23 = arith.constant 0 : index
    %65 = vector.load %arg4[%c6_22, %c0_23] : memref<32x128xf32, #tpu.memory_space<vmem>>, vector<1x128xf32>
    %66 = vector.shape_cast %64 : vector<1x8xf32> to vector<1x8x1xf32>
    %67 = vector.shape_cast %65 : vector<1x128xf32> to vector<1x1x128xf32>
    %68 = vector.broadcast %66 : vector<1x8x1xf32> to vector<1x8x128xf32>
    %69 = vector.broadcast %67 : vector<1x1x128xf32> to vector<1x8x128xf32>
    %70 = arith.subf %68, %69 : vector<1x8x128xf32>
    %71 = vector.shape_cast %70 : vector<1x8x128xf32> to vector<8x128xf32>
    %72 = arith.mulf %71, %71 : vector<8x128xf32>
    %73 = arith.maximumf %63, %72 : vector<8x128xf32>
    %c7 = arith.constant 7 : index
    %c0_24 = arith.constant 0 : index
    %74 = vector.load %arg3[%c7, %c0_24] : memref<32x8xf32, #tpu.memory_space<vmem>>, vector<1x8xf32>
    %c7_25 = arith.constant 7 : index
    %c0_26 = arith.constant 0 : index
    %75 = vector.load %arg4[%c7_25, %c0_26] : memref<32x128xf32, #tpu.memory_space<vmem>>, vector<1x128xf32>
    %76 = vector.shape_cast %74 : vector<1x8xf32> to vector<1x8x1xf32>
    %77 = vector.shape_cast %75 : vector<1x128xf32> to vector<1x1x128xf32>
    %78 = vector.broadcast %76 : vector<1x8x1xf32> to vector<1x8x128xf32>
    %79 = vector.broadcast %77 : vector<1x1x128xf32> to vector<1x8x128xf32>
    %80 = arith.subf %78, %79 : vector<1x8x128xf32>
    %81 = vector.shape_cast %80 : vector<1x8x128xf32> to vector<8x128xf32>
    %82 = arith.mulf %81, %81 : vector<8x128xf32>
    %83 = arith.maximumf %73, %82 : vector<8x128xf32>
    %c8 = arith.constant 8 : index
    %c0_27 = arith.constant 0 : index
    %84 = vector.load %arg3[%c8, %c0_27] : memref<32x8xf32, #tpu.memory_space<vmem>>, vector<1x8xf32>
    %c8_28 = arith.constant 8 : index
    %c0_29 = arith.constant 0 : index
    %85 = vector.load %arg4[%c8_28, %c0_29] : memref<32x128xf32, #tpu.memory_space<vmem>>, vector<1x128xf32>
    %86 = vector.shape_cast %84 : vector<1x8xf32> to vector<1x8x1xf32>
    %87 = vector.shape_cast %85 : vector<1x128xf32> to vector<1x1x128xf32>
    %88 = vector.broadcast %86 : vector<1x8x1xf32> to vector<1x8x128xf32>
    %89 = vector.broadcast %87 : vector<1x1x128xf32> to vector<1x8x128xf32>
    %90 = arith.subf %88, %89 : vector<1x8x128xf32>
    %91 = vector.shape_cast %90 : vector<1x8x128xf32> to vector<8x128xf32>
    %92 = arith.mulf %91, %91 : vector<8x128xf32>
    %93 = arith.maximumf %83, %92 : vector<8x128xf32>
    %c9 = arith.constant 9 : index
    %c0_30 = arith.constant 0 : index
    %94 = vector.load %arg3[%c9, %c0_30] : memref<32x8xf32, #tpu.memory_space<vmem>>, vector<1x8xf32>
    %c9_31 = arith.constant 9 : index
    %c0_32 = arith.constant 0 : index
    %95 = vector.load %arg4[%c9_31, %c0_32] : memref<32x128xf32, #tpu.memory_space<vmem>>, vector<1x128xf32>
    %96 = vector.shape_cast %94 : vector<1x8xf32> to vector<1x8x1xf32>
    %97 = vector.shape_cast %95 : vector<1x128xf32> to vector<1x1x128xf32>
    %98 = vector.broadcast %96 : vector<1x8x1xf32> to vector<1x8x128xf32>
    %99 = vector.broadcast %97 : vector<1x1x128xf32> to vector<1x8x128xf32>
    %100 = arith.subf %98, %99 : vector<1x8x128xf32>
    %101 = vector.shape_cast %100 : vector<1x8x128xf32> to vector<8x128xf32>
    %102 = arith.mulf %101, %101 : vector<8x128xf32>
    %103 = arith.maximumf %93, %102 : vector<8x128xf32>
    %c10 = arith.constant 10 : index
    %c0_33 = arith.constant 0 : index
    %104 = vector.load %arg3[%c10, %c0_33] : memref<32x8xf32, #tpu.memory_space<vmem>>, vector<1x8xf32>
    %c10_34 = arith.constant 10 : index
    %c0_35 = arith.constant 0 : index
    %105 = vector.load %arg4[%c10_34, %c0_35] : memref<32x128xf32, #tpu.memory_space<vmem>>, vector<1x128xf32>
    %106 = vector.shape_cast %104 : vector<1x8xf32> to vector<1x8x1xf32>
    %107 = vector.shape_cast %105 : vector<1x128xf32> to vector<1x1x128xf32>
    %108 = vector.broadcast %106 : vector<1x8x1xf32> to vector<1x8x128xf32>
    %109 = vector.broadcast %107 : vector<1x1x128xf32> to vector<1x8x128xf32>
    %110 = arith.subf %108, %109 : vector<1x8x128xf32>
    %111 = vector.shape_cast %110 : vector<1x8x128xf32> to vector<8x128xf32>
    %112 = arith.mulf %111, %111 : vector<8x128xf32>
    %113 = arith.maximumf %103, %112 : vector<8x128xf32>
    %c11 = arith.constant 11 : index
    %c0_36 = arith.constant 0 : index
    %114 = vector.load %arg3[%c11, %c0_36] : memref<32x8xf32, #tpu.memory_space<vmem>>, vector<1x8xf32>
    %c11_37 = arith.constant 11 : index
    %c0_38 = arith.constant 0 : index
    %115 = vector.load %arg4[%c11_37, %c0_38] : memref<32x128xf32, #tpu.memory_space<vmem>>, vector<1x128xf32>
    %116 = vector.shape_cast %114 : vector<1x8xf32> to vector<1x8x1xf32>
    %117 = vector.shape_cast %115 : vector<1x128xf32> to vector<1x1x128xf32>
    %118 = vector.broadcast %116 : vector<1x8x1xf32> to vector<1x8x128xf32>
    %119 = vector.broadcast %117 : vector<1x1x128xf32> to vector<1x8x128xf32>
    %120 = arith.subf %118, %119 : vector<1x8x128xf32>
    %121 = vector.shape_cast %120 : vector<1x8x128xf32> to vector<8x128xf32>
    %122 = arith.mulf %121, %121 : vector<8x128xf32>
    %123 = arith.maximumf %113, %122 : vector<8x128xf32>
    %c12 = arith.constant 12 : index
    %c0_39 = arith.constant 0 : index
    %124 = vector.load %arg3[%c12, %c0_39] : memref<32x8xf32, #tpu.memory_space<vmem>>, vector<1x8xf32>
    %c12_40 = arith.constant 12 : index
    %c0_41 = arith.constant 0 : index
    %125 = vector.load %arg4[%c12_40, %c0_41] : memref<32x128xf32, #tpu.memory_space<vmem>>, vector<1x128xf32>
    %126 = vector.shape_cast %124 : vector<1x8xf32> to vector<1x8x1xf32>
    %127 = vector.shape_cast %125 : vector<1x128xf32> to vector<1x1x128xf32>
    %128 = vector.broadcast %126 : vector<1x8x1xf32> to vector<1x8x128xf32>
    %129 = vector.broadcast %127 : vector<1x1x128xf32> to vector<1x8x128xf32>
    %130 = arith.subf %128, %129 : vector<1x8x128xf32>
    %131 = vector.shape_cast %130 : vector<1x8x128xf32> to vector<8x128xf32>
    %132 = arith.mulf %131, %131 : vector<8x128xf32>
    %133 = arith.maximumf %123, %132 : vector<8x128xf32>
    %c13 = arith.constant 13 : index
    %c0_42 = arith.constant 0 : index
    %134 = vector.load %arg3[%c13, %c0_42] : memref<32x8xf32, #tpu.memory_space<vmem>>, vector<1x8xf32>
    %c13_43 = arith.constant 13 : index
    %c0_44 = arith.constant 0 : index
    %135 = vector.load %arg4[%c13_43, %c0_44] : memref<32x128xf32, #tpu.memory_space<vmem>>, vector<1x128xf32>
    %136 = vector.shape_cast %134 : vector<1x8xf32> to vector<1x8x1xf32>
    %137 = vector.shape_cast %135 : vector<1x128xf32> to vector<1x1x128xf32>
    %138 = vector.broadcast %136 : vector<1x8x1xf32> to vector<1x8x128xf32>
    %139 = vector.broadcast %137 : vector<1x1x128xf32> to vector<1x8x128xf32>
    %140 = arith.subf %138, %139 : vector<1x8x128xf32>
    %141 = vector.shape_cast %140 : vector<1x8x128xf32> to vector<8x128xf32>
    %142 = arith.mulf %141, %141 : vector<8x128xf32>
    %143 = arith.maximumf %133, %142 : vector<8x128xf32>
    %c14 = arith.constant 14 : index
    %c0_45 = arith.constant 0 : index
    %144 = vector.load %arg3[%c14, %c0_45] : memref<32x8xf32, #tpu.memory_space<vmem>>, vector<1x8xf32>
    %c14_46 = arith.constant 14 : index
    %c0_47 = arith.constant 0 : index
    %145 = vector.load %arg4[%c14_46, %c0_47] : memref<32x128xf32, #tpu.memory_space<vmem>>, vector<1x128xf32>
    %146 = vector.shape_cast %144 : vector<1x8xf32> to vector<1x8x1xf32>
    %147 = vector.shape_cast %145 : vector<1x128xf32> to vector<1x1x128xf32>
    %148 = vector.broadcast %146 : vector<1x8x1xf32> to vector<1x8x128xf32>
    %149 = vector.broadcast %147 : vector<1x1x128xf32> to vector<1x8x128xf32>
    %150 = arith.subf %148, %149 : vector<1x8x128xf32>
    %151 = vector.shape_cast %150 : vector<1x8x128xf32> to vector<8x128xf32>
    %152 = arith.mulf %151, %151 : vector<8x128xf32>
    %153 = arith.maximumf %143, %152 : vector<8x128xf32>
    %c15 = arith.constant 15 : index
    %c0_48 = arith.constant 0 : index
    %154 = vector.load %arg3[%c15, %c0_48] : memref<32x8xf32, #tpu.memory_space<vmem>>, vector<1x8xf32>
    %c15_49 = arith.constant 15 : index
    %c0_50 = arith.constant 0 : index
    %155 = vector.load %arg4[%c15_49, %c0_50] : memref<32x128xf32, #tpu.memory_space<vmem>>, vector<1x128xf32>
    %156 = vector.shape_cast %154 : vector<1x8xf32> to vector<1x8x1xf32>
    %157 = vector.shape_cast %155 : vector<1x128xf32> to vector<1x1x128xf32>
    %158 = vector.broadcast %156 : vector<1x8x1xf32> to vector<1x8x128xf32>
    %159 = vector.broadcast %157 : vector<1x1x128xf32> to vector<1x8x128xf32>
    %160 = arith.subf %158, %159 : vector<1x8x128xf32>
    %161 = vector.shape_cast %160 : vector<1x8x128xf32> to vector<8x128xf32>
    %162 = arith.mulf %161, %161 : vector<8x128xf32>
    %163 = arith.maximumf %153, %162 : vector<8x128xf32>
    %c16 = arith.constant 16 : index
    %c0_51 = arith.constant 0 : index
    %164 = vector.load %arg3[%c16, %c0_51] : memref<32x8xf32, #tpu.memory_space<vmem>>, vector<1x8xf32>
    %c16_52 = arith.constant 16 : index
    %c0_53 = arith.constant 0 : index
    %165 = vector.load %arg4[%c16_52, %c0_53] : memref<32x128xf32, #tpu.memory_space<vmem>>, vector<1x128xf32>
    %166 = vector.shape_cast %164 : vector<1x8xf32> to vector<1x8x1xf32>
    %167 = vector.shape_cast %165 : vector<1x128xf32> to vector<1x1x128xf32>
    %168 = vector.broadcast %166 : vector<1x8x1xf32> to vector<1x8x128xf32>
    %169 = vector.broadcast %167 : vector<1x1x128xf32> to vector<1x8x128xf32>
    %170 = arith.subf %168, %169 : vector<1x8x128xf32>
    %171 = vector.shape_cast %170 : vector<1x8x128xf32> to vector<8x128xf32>
    %172 = arith.mulf %171, %171 : vector<8x128xf32>
    %173 = arith.maximumf %163, %172 : vector<8x128xf32>
    %c17 = arith.constant 17 : index
    %c0_54 = arith.constant 0 : index
    %174 = vector.load %arg3[%c17, %c0_54] : memref<32x8xf32, #tpu.memory_space<vmem>>, vector<1x8xf32>
    %c17_55 = arith.constant 17 : index
    %c0_56 = arith.constant 0 : index
    %175 = vector.load %arg4[%c17_55, %c0_56] : memref<32x128xf32, #tpu.memory_space<vmem>>, vector<1x128xf32>
    %176 = vector.shape_cast %174 : vector<1x8xf32> to vector<1x8x1xf32>
    %177 = vector.shape_cast %175 : vector<1x128xf32> to vector<1x1x128xf32>
    %178 = vector.broadcast %176 : vector<1x8x1xf32> to vector<1x8x128xf32>
    %179 = vector.broadcast %177 : vector<1x1x128xf32> to vector<1x8x128xf32>
    %180 = arith.subf %178, %179 : vector<1x8x128xf32>
    %181 = vector.shape_cast %180 : vector<1x8x128xf32> to vector<8x128xf32>
    %182 = arith.mulf %181, %181 : vector<8x128xf32>
    %183 = arith.maximumf %173, %182 : vector<8x128xf32>
    %c18 = arith.constant 18 : index
    %c0_57 = arith.constant 0 : index
    %184 = vector.load %arg3[%c18, %c0_57] : memref<32x8xf32, #tpu.memory_space<vmem>>, vector<1x8xf32>
    %c18_58 = arith.constant 18 : index
    %c0_59 = arith.constant 0 : index
    %185 = vector.load %arg4[%c18_58, %c0_59] : memref<32x128xf32, #tpu.memory_space<vmem>>, vector<1x128xf32>
    %186 = vector.shape_cast %184 : vector<1x8xf32> to vector<1x8x1xf32>
    %187 = vector.shape_cast %185 : vector<1x128xf32> to vector<1x1x128xf32>
    %188 = vector.broadcast %186 : vector<1x8x1xf32> to vector<1x8x128xf32>
    %189 = vector.broadcast %187 : vector<1x1x128xf32> to vector<1x8x128xf32>
    %190 = arith.subf %188, %189 : vector<1x8x128xf32>
    %191 = vector.shape_cast %190 : vector<1x8x128xf32> to vector<8x128xf32>
    %192 = arith.mulf %191, %191 : vector<8x128xf32>
    %193 = arith.maximumf %183, %192 : vector<8x128xf32>
    %c19 = arith.constant 19 : index
    %c0_60 = arith.constant 0 : index
    %194 = vector.load %arg3[%c19, %c0_60] : memref<32x8xf32, #tpu.memory_space<vmem>>, vector<1x8xf32>
    %c19_61 = arith.constant 19 : index
    %c0_62 = arith.constant 0 : index
    %195 = vector.load %arg4[%c19_61, %c0_62] : memref<32x128xf32, #tpu.memory_space<vmem>>, vector<1x128xf32>
    %196 = vector.shape_cast %194 : vector<1x8xf32> to vector<1x8x1xf32>
    %197 = vector.shape_cast %195 : vector<1x128xf32> to vector<1x1x128xf32>
    %198 = vector.broadcast %196 : vector<1x8x1xf32> to vector<1x8x128xf32>
    %199 = vector.broadcast %197 : vector<1x1x128xf32> to vector<1x8x128xf32>
    %200 = arith.subf %198, %199 : vector<1x8x128xf32>
    %201 = vector.shape_cast %200 : vector<1x8x128xf32> to vector<8x128xf32>
    %202 = arith.mulf %201, %201 : vector<8x128xf32>
    %203 = arith.maximumf %193, %202 : vector<8x128xf32>
    %c20 = arith.constant 20 : index
    %c0_63 = arith.constant 0 : index
    %204 = vector.load %arg3[%c20, %c0_63] : memref<32x8xf32, #tpu.memory_space<vmem>>, vector<1x8xf32>
    %c20_64 = arith.constant 20 : index
    %c0_65 = arith.constant 0 : index
    %205 = vector.load %arg4[%c20_64, %c0_65] : memref<32x128xf32, #tpu.memory_space<vmem>>, vector<1x128xf32>
    %206 = vector.shape_cast %204 : vector<1x8xf32> to vector<1x8x1xf32>
    %207 = vector.shape_cast %205 : vector<1x128xf32> to vector<1x1x128xf32>
    %208 = vector.broadcast %206 : vector<1x8x1xf32> to vector<1x8x128xf32>
    %209 = vector.broadcast %207 : vector<1x1x128xf32> to vector<1x8x128xf32>
    %210 = arith.subf %208, %209 : vector<1x8x128xf32>
    %211 = vector.shape_cast %210 : vector<1x8x128xf32> to vector<8x128xf32>
    %212 = arith.mulf %211, %211 : vector<8x128xf32>
    %213 = arith.maximumf %203, %212 : vector<8x128xf32>
    %c21 = arith.constant 21 : index
    %c0_66 = arith.constant 0 : index
    %214 = vector.load %arg3[%c21, %c0_66] : memref<32x8xf32, #tpu.memory_space<vmem>>, vector<1x8xf32>
    %c21_67 = arith.constant 21 : index
    %c0_68 = arith.constant 0 : index
    %215 = vector.load %arg4[%c21_67, %c0_68] : memref<32x128xf32, #tpu.memory_space<vmem>>, vector<1x128xf32>
    %216 = vector.shape_cast %214 : vector<1x8xf32> to vector<1x8x1xf32>
    %217 = vector.shape_cast %215 : vector<1x128xf32> to vector<1x1x128xf32>
    %218 = vector.broadcast %216 : vector<1x8x1xf32> to vector<1x8x128xf32>
    %219 = vector.broadcast %217 : vector<1x1x128xf32> to vector<1x8x128xf32>
    %220 = arith.subf %218, %219 : vector<1x8x128xf32>
    %221 = vector.shape_cast %220 : vector<1x8x128xf32> to vector<8x128xf32>
    %222 = arith.mulf %221, %221 : vector<8x128xf32>
    %223 = arith.maximumf %213, %222 : vector<8x128xf32>
    %c22 = arith.constant 22 : index
    %c0_69 = arith.constant 0 : index
    %224 = vector.load %arg3[%c22, %c0_69] : memref<32x8xf32, #tpu.memory_space<vmem>>, vector<1x8xf32>
    %c22_70 = arith.constant 22 : index
    %c0_71 = arith.constant 0 : index
    %225 = vector.load %arg4[%c22_70, %c0_71] : memref<32x128xf32, #tpu.memory_space<vmem>>, vector<1x128xf32>
    %226 = vector.shape_cast %224 : vector<1x8xf32> to vector<1x8x1xf32>
    %227 = vector.shape_cast %225 : vector<1x128xf32> to vector<1x1x128xf32>
    %228 = vector.broadcast %226 : vector<1x8x1xf32> to vector<1x8x128xf32>
    %229 = vector.broadcast %227 : vector<1x1x128xf32> to vector<1x8x128xf32>
    %230 = arith.subf %228, %229 : vector<1x8x128xf32>
    %231 = vector.shape_cast %230 : vector<1x8x128xf32> to vector<8x128xf32>
    %232 = arith.mulf %231, %231 : vector<8x128xf32>
    %233 = arith.maximumf %223, %232 : vector<8x128xf32>
    %c23 = arith.constant 23 : index
    %c0_72 = arith.constant 0 : index
    %234 = vector.load %arg3[%c23, %c0_72] : memref<32x8xf32, #tpu.memory_space<vmem>>, vector<1x8xf32>
    %c23_73 = arith.constant 23 : index
    %c0_74 = arith.constant 0 : index
    %235 = vector.load %arg4[%c23_73, %c0_74] : memref<32x128xf32, #tpu.memory_space<vmem>>, vector<1x128xf32>
    %236 = vector.shape_cast %234 : vector<1x8xf32> to vector<1x8x1xf32>
    %237 = vector.shape_cast %235 : vector<1x128xf32> to vector<1x1x128xf32>
    %238 = vector.broadcast %236 : vector<1x8x1xf32> to vector<1x8x128xf32>
    %239 = vector.broadcast %237 : vector<1x1x128xf32> to vector<1x8x128xf32>
    %240 = arith.subf %238, %239 : vector<1x8x128xf32>
    %241 = vector.shape_cast %240 : vector<1x8x128xf32> to vector<8x128xf32>
    %242 = arith.mulf %241, %241 : vector<8x128xf32>
    %243 = arith.maximumf %233, %242 : vector<8x128xf32>
    %c24 = arith.constant 24 : index
    %c0_75 = arith.constant 0 : index
    %244 = vector.load %arg3[%c24, %c0_75] : memref<32x8xf32, #tpu.memory_space<vmem>>, vector<1x8xf32>
    %c24_76 = arith.constant 24 : index
    %c0_77 = arith.constant 0 : index
    %245 = vector.load %arg4[%c24_76, %c0_77] : memref<32x128xf32, #tpu.memory_space<vmem>>, vector<1x128xf32>
    %246 = vector.shape_cast %244 : vector<1x8xf32> to vector<1x8x1xf32>
    %247 = vector.shape_cast %245 : vector<1x128xf32> to vector<1x1x128xf32>
    %248 = vector.broadcast %246 : vector<1x8x1xf32> to vector<1x8x128xf32>
    %249 = vector.broadcast %247 : vector<1x1x128xf32> to vector<1x8x128xf32>
    %250 = arith.subf %248, %249 : vector<1x8x128xf32>
    %251 = vector.shape_cast %250 : vector<1x8x128xf32> to vector<8x128xf32>
    %252 = arith.mulf %251, %251 : vector<8x128xf32>
    %253 = arith.maximumf %243, %252 : vector<8x128xf32>
    %c25 = arith.constant 25 : index
    %c0_78 = arith.constant 0 : index
    %254 = vector.load %arg3[%c25, %c0_78] : memref<32x8xf32, #tpu.memory_space<vmem>>, vector<1x8xf32>
    %c25_79 = arith.constant 25 : index
    %c0_80 = arith.constant 0 : index
    %255 = vector.load %arg4[%c25_79, %c0_80] : memref<32x128xf32, #tpu.memory_space<vmem>>, vector<1x128xf32>
    %256 = vector.shape_cast %254 : vector<1x8xf32> to vector<1x8x1xf32>
    %257 = vector.shape_cast %255 : vector<1x128xf32> to vector<1x1x128xf32>
    %258 = vector.broadcast %256 : vector<1x8x1xf32> to vector<1x8x128xf32>
    %259 = vector.broadcast %257 : vector<1x1x128xf32> to vector<1x8x128xf32>
    %260 = arith.subf %258, %259 : vector<1x8x128xf32>
    %261 = vector.shape_cast %260 : vector<1x8x128xf32> to vector<8x128xf32>
    %262 = arith.mulf %261, %261 : vector<8x128xf32>
    %263 = arith.maximumf %253, %262 : vector<8x128xf32>
    %c26 = arith.constant 26 : index
    %c0_81 = arith.constant 0 : index
    %264 = vector.load %arg3[%c26, %c0_81] : memref<32x8xf32, #tpu.memory_space<vmem>>, vector<1x8xf32>
    %c26_82 = arith.constant 26 : index
    %c0_83 = arith.constant 0 : index
    %265 = vector.load %arg4[%c26_82, %c0_83] : memref<32x128xf32, #tpu.memory_space<vmem>>, vector<1x128xf32>
    %266 = vector.shape_cast %264 : vector<1x8xf32> to vector<1x8x1xf32>
    %267 = vector.shape_cast %265 : vector<1x128xf32> to vector<1x1x128xf32>
    %268 = vector.broadcast %266 : vector<1x8x1xf32> to vector<1x8x128xf32>
    %269 = vector.broadcast %267 : vector<1x1x128xf32> to vector<1x8x128xf32>
    %270 = arith.subf %268, %269 : vector<1x8x128xf32>
    %271 = vector.shape_cast %270 : vector<1x8x128xf32> to vector<8x128xf32>
    %272 = arith.mulf %271, %271 : vector<8x128xf32>
    %273 = arith.maximumf %263, %272 : vector<8x128xf32>
    %c27 = arith.constant 27 : index
    %c0_84 = arith.constant 0 : index
    %274 = vector.load %arg3[%c27, %c0_84] : memref<32x8xf32, #tpu.memory_space<vmem>>, vector<1x8xf32>
    %c27_85 = arith.constant 27 : index
    %c0_86 = arith.constant 0 : index
    %275 = vector.load %arg4[%c27_85, %c0_86] : memref<32x128xf32, #tpu.memory_space<vmem>>, vector<1x128xf32>
    %276 = vector.shape_cast %274 : vector<1x8xf32> to vector<1x8x1xf32>
    %277 = vector.shape_cast %275 : vector<1x128xf32> to vector<1x1x128xf32>
    %278 = vector.broadcast %276 : vector<1x8x1xf32> to vector<1x8x128xf32>
    %279 = vector.broadcast %277 : vector<1x1x128xf32> to vector<1x8x128xf32>
    %280 = arith.subf %278, %279 : vector<1x8x128xf32>
    %281 = vector.shape_cast %280 : vector<1x8x128xf32> to vector<8x128xf32>
    %282 = arith.mulf %281, %281 : vector<8x128xf32>
    %283 = arith.maximumf %273, %282 : vector<8x128xf32>
    %c28 = arith.constant 28 : index
    %c0_87 = arith.constant 0 : index
    %284 = vector.load %arg3[%c28, %c0_87] : memref<32x8xf32, #tpu.memory_space<vmem>>, vector<1x8xf32>
    %c28_88 = arith.constant 28 : index
    %c0_89 = arith.constant 0 : index
    %285 = vector.load %arg4[%c28_88, %c0_89] : memref<32x128xf32, #tpu.memory_space<vmem>>, vector<1x128xf32>
    %286 = vector.shape_cast %284 : vector<1x8xf32> to vector<1x8x1xf32>
    %287 = vector.shape_cast %285 : vector<1x128xf32> to vector<1x1x128xf32>
    %288 = vector.broadcast %286 : vector<1x8x1xf32> to vector<1x8x128xf32>
    %289 = vector.broadcast %287 : vector<1x1x128xf32> to vector<1x8x128xf32>
    %290 = arith.subf %288, %289 : vector<1x8x128xf32>
    %291 = vector.shape_cast %290 : vector<1x8x128xf32> to vector<8x128xf32>
    %292 = arith.mulf %291, %291 : vector<8x128xf32>
    %293 = arith.maximumf %283, %292 : vector<8x128xf32>
    %c29 = arith.constant 29 : index
    %c0_90 = arith.constant 0 : index
    %294 = vector.load %arg3[%c29, %c0_90] : memref<32x8xf32, #tpu.memory_space<vmem>>, vector<1x8xf32>
    %c29_91 = arith.constant 29 : index
    %c0_92 = arith.constant 0 : index
    %295 = vector.load %arg4[%c29_91, %c0_92] : memref<32x128xf32, #tpu.memory_space<vmem>>, vector<1x128xf32>
    %296 = vector.shape_cast %294 : vector<1x8xf32> to vector<1x8x1xf32>
    %297 = vector.shape_cast %295 : vector<1x128xf32> to vector<1x1x128xf32>
    %298 = vector.broadcast %296 : vector<1x8x1xf32> to vector<1x8x128xf32>
    %299 = vector.broadcast %297 : vector<1x1x128xf32> to vector<1x8x128xf32>
    %300 = arith.subf %298, %299 : vector<1x8x128xf32>
    %301 = vector.shape_cast %300 : vector<1x8x128xf32> to vector<8x128xf32>
    %302 = arith.mulf %301, %301 : vector<8x128xf32>
    %303 = arith.maximumf %293, %302 : vector<8x128xf32>
    %c30 = arith.constant 30 : index
    %c0_93 = arith.constant 0 : index
    %304 = vector.load %arg3[%c30, %c0_93] : memref<32x8xf32, #tpu.memory_space<vmem>>, vector<1x8xf32>
    %c30_94 = arith.constant 30 : index
    %c0_95 = arith.constant 0 : index
    %305 = vector.load %arg4[%c30_94, %c0_95] : memref<32x128xf32, #tpu.memory_space<vmem>>, vector<1x128xf32>
    %306 = vector.shape_cast %304 : vector<1x8xf32> to vector<1x8x1xf32>
    %307 = vector.shape_cast %305 : vector<1x128xf32> to vector<1x1x128xf32>
    %308 = vector.broadcast %306 : vector<1x8x1xf32> to vector<1x8x128xf32>
    %309 = vector.broadcast %307 : vector<1x1x128xf32> to vector<1x8x128xf32>
    %310 = arith.subf %308, %309 : vector<1x8x128xf32>
    %311 = vector.shape_cast %310 : vector<1x8x128xf32> to vector<8x128xf32>
    %312 = arith.mulf %311, %311 : vector<8x128xf32>
    %313 = arith.maximumf %303, %312 : vector<8x128xf32>
    %c31 = arith.constant 31 : index
    %c0_96 = arith.constant 0 : index
    %314 = vector.load %arg3[%c31, %c0_96] : memref<32x8xf32, #tpu.memory_space<vmem>>, vector<1x8xf32>
    %c31_97 = arith.constant 31 : index
    %c0_98 = arith.constant 0 : index
    %315 = vector.load %arg4[%c31_97, %c0_98] : memref<32x128xf32, #tpu.memory_space<vmem>>, vector<1x128xf32>
    %316 = vector.shape_cast %314 : vector<1x8xf32> to vector<1x8x1xf32>
    %317 = vector.shape_cast %315 : vector<1x128xf32> to vector<1x1x128xf32>
    %318 = vector.broadcast %316 : vector<1x8x1xf32> to vector<1x8x128xf32>
    %319 = vector.broadcast %317 : vector<1x1x128xf32> to vector<1x8x128xf32>
    %320 = arith.subf %318, %319 : vector<1x8x128xf32>
    %321 = vector.shape_cast %320 : vector<1x8x128xf32> to vector<8x128xf32>
    %322 = arith.mulf %321, %321 : vector<8x128xf32>
    %323 = arith.maximumf %313, %322 : vector<8x128xf32>
    %cst = arith.constant 1.000000e-30 : f32
    %324 = vector.broadcast %cst : f32 to vector<8x128xf32>
    %325 = arith.maximumf %323, %324 : vector<8x128xf32>
    %cst_99 = arith.constant 1.000000e+00 : f32
    %326 = vector.broadcast %cst_99 : f32 to vector<8x128xf32>
    %327 = arith.divf %326, %325 : vector<8x128xf32>
    %c0_100 = arith.constant 0 : index
    %c0_101 = arith.constant 0 : index
    %328 = vector.load %arg8[%c0_100, %c0_101] : memref<8x128xf32, #tpu.memory_space<vmem>>, vector<8x128xf32>
    %329 = arith.mulf %3, %327 : vector<8x128xf32>
    %330 = arith.mulf %329, %329 : vector<8x128xf32>
    %331 = arith.mulf %330, %330 : vector<8x128xf32>
    %332 = arith.mulf %328, %331 : vector<8x128xf32>
    %c0_102 = arith.constant 0 : index
    %c0_103 = arith.constant 0 : index
    %333 = vector.load %arg3[%c0_102, %c0_103] : memref<32x8xf32, #tpu.memory_space<vmem>>, vector<1x8xf32>
    %c0_104 = arith.constant 0 : index
    %c0_105 = arith.constant 0 : index
    %334 = vector.load %arg4[%c0_104, %c0_105] : memref<32x128xf32, #tpu.memory_space<vmem>>, vector<1x128xf32>
    %335 = vector.shape_cast %333 : vector<1x8xf32> to vector<1x8x1xf32>
    %336 = vector.shape_cast %334 : vector<1x128xf32> to vector<1x1x128xf32>
    %337 = vector.broadcast %335 : vector<1x8x1xf32> to vector<1x8x128xf32>
    %338 = vector.broadcast %336 : vector<1x1x128xf32> to vector<1x8x128xf32>
    %339 = arith.subf %337, %338 : vector<1x8x128xf32>
    %340 = vector.shape_cast %339 : vector<1x8x128xf32> to vector<8x128xf32>
    %341 = arith.mulf %340, %340 : vector<8x128xf32>
    %342 = arith.mulf %341, %327 : vector<8x128xf32>
    %343 = arith.mulf %342, %342 : vector<8x128xf32>
    %344 = arith.mulf %343, %343 : vector<8x128xf32>
    %345 = arith.addf %332, %344 : vector<8x128xf32>
    %c1_106 = arith.constant 1 : index
    %c0_107 = arith.constant 0 : index
    %346 = vector.load %arg3[%c1_106, %c0_107] : memref<32x8xf32, #tpu.memory_space<vmem>>, vector<1x8xf32>
    %c1_108 = arith.constant 1 : index
    %c0_109 = arith.constant 0 : index
    %347 = vector.load %arg4[%c1_108, %c0_109] : memref<32x128xf32, #tpu.memory_space<vmem>>, vector<1x128xf32>
    %348 = vector.shape_cast %346 : vector<1x8xf32> to vector<1x8x1xf32>
    %349 = vector.shape_cast %347 : vector<1x128xf32> to vector<1x1x128xf32>
    %350 = vector.broadcast %348 : vector<1x8x1xf32> to vector<1x8x128xf32>
    %351 = vector.broadcast %349 : vector<1x1x128xf32> to vector<1x8x128xf32>
    %352 = arith.subf %350, %351 : vector<1x8x128xf32>
    %353 = vector.shape_cast %352 : vector<1x8x128xf32> to vector<8x128xf32>
    %354 = arith.mulf %353, %353 : vector<8x128xf32>
    %355 = arith.mulf %354, %327 : vector<8x128xf32>
    %356 = arith.mulf %355, %355 : vector<8x128xf32>
    %357 = arith.mulf %356, %356 : vector<8x128xf32>
    %358 = arith.addf %345, %357 : vector<8x128xf32>
    %c2_110 = arith.constant 2 : index
    %c0_111 = arith.constant 0 : index
    %359 = vector.load %arg3[%c2_110, %c0_111] : memref<32x8xf32, #tpu.memory_space<vmem>>, vector<1x8xf32>
    %c2_112 = arith.constant 2 : index
    %c0_113 = arith.constant 0 : index
    %360 = vector.load %arg4[%c2_112, %c0_113] : memref<32x128xf32, #tpu.memory_space<vmem>>, vector<1x128xf32>
    %361 = vector.shape_cast %359 : vector<1x8xf32> to vector<1x8x1xf32>
    %362 = vector.shape_cast %360 : vector<1x128xf32> to vector<1x1x128xf32>
    %363 = vector.broadcast %361 : vector<1x8x1xf32> to vector<1x8x128xf32>
    %364 = vector.broadcast %362 : vector<1x1x128xf32> to vector<1x8x128xf32>
    %365 = arith.subf %363, %364 : vector<1x8x128xf32>
    %366 = vector.shape_cast %365 : vector<1x8x128xf32> to vector<8x128xf32>
    %367 = arith.mulf %366, %366 : vector<8x128xf32>
    %368 = arith.mulf %367, %327 : vector<8x128xf32>
    %369 = arith.mulf %368, %368 : vector<8x128xf32>
    %370 = arith.mulf %369, %369 : vector<8x128xf32>
    %371 = arith.addf %358, %370 : vector<8x128xf32>
    %c3_114 = arith.constant 3 : index
    %c0_115 = arith.constant 0 : index
    %372 = vector.load %arg3[%c3_114, %c0_115] : memref<32x8xf32, #tpu.memory_space<vmem>>, vector<1x8xf32>
    %c3_116 = arith.constant 3 : index
    %c0_117 = arith.constant 0 : index
    %373 = vector.load %arg4[%c3_116, %c0_117] : memref<32x128xf32, #tpu.memory_space<vmem>>, vector<1x128xf32>
    %374 = vector.shape_cast %372 : vector<1x8xf32> to vector<1x8x1xf32>
    %375 = vector.shape_cast %373 : vector<1x128xf32> to vector<1x1x128xf32>
    %376 = vector.broadcast %374 : vector<1x8x1xf32> to vector<1x8x128xf32>
    %377 = vector.broadcast %375 : vector<1x1x128xf32> to vector<1x8x128xf32>
    %378 = arith.subf %376, %377 : vector<1x8x128xf32>
    %379 = vector.shape_cast %378 : vector<1x8x128xf32> to vector<8x128xf32>
    %380 = arith.mulf %379, %379 : vector<8x128xf32>
    %381 = arith.mulf %380, %327 : vector<8x128xf32>
    %382 = arith.mulf %381, %381 : vector<8x128xf32>
    %383 = arith.mulf %382, %382 : vector<8x128xf32>
    %384 = arith.addf %371, %383 : vector<8x128xf32>
    %c4_118 = arith.constant 4 : index
    %c0_119 = arith.constant 0 : index
    %385 = vector.load %arg3[%c4_118, %c0_119] : memref<32x8xf32, #tpu.memory_space<vmem>>, vector<1x8xf32>
    %c4_120 = arith.constant 4 : index
    %c0_121 = arith.constant 0 : index
    %386 = vector.load %arg4[%c4_120, %c0_121] : memref<32x128xf32, #tpu.memory_space<vmem>>, vector<1x128xf32>
    %387 = vector.shape_cast %385 : vector<1x8xf32> to vector<1x8x1xf32>
    %388 = vector.shape_cast %386 : vector<1x128xf32> to vector<1x1x128xf32>
    %389 = vector.broadcast %387 : vector<1x8x1xf32> to vector<1x8x128xf32>
    %390 = vector.broadcast %388 : vector<1x1x128xf32> to vector<1x8x128xf32>
    %391 = arith.subf %389, %390 : vector<1x8x128xf32>
    %392 = vector.shape_cast %391 : vector<1x8x128xf32> to vector<8x128xf32>
    %393 = arith.mulf %392, %392 : vector<8x128xf32>
    %394 = arith.mulf %393, %327 : vector<8x128xf32>
    %395 = arith.mulf %394, %394 : vector<8x128xf32>
    %396 = arith.mulf %395, %395 : vector<8x128xf32>
    %397 = arith.addf %384, %396 : vector<8x128xf32>
    %c5_122 = arith.constant 5 : index
    %c0_123 = arith.constant 0 : index
    %398 = vector.load %arg3[%c5_122, %c0_123] : memref<32x8xf32, #tpu.memory_space<vmem>>, vector<1x8xf32>
    %c5_124 = arith.constant 5 : index
    %c0_125 = arith.constant 0 : index
    %399 = vector.load %arg4[%c5_124, %c0_125] : memref<32x128xf32, #tpu.memory_space<vmem>>, vector<1x128xf32>
    %400 = vector.shape_cast %398 : vector<1x8xf32> to vector<1x8x1xf32>
    %401 = vector.shape_cast %399 : vector<1x128xf32> to vector<1x1x128xf32>
    %402 = vector.broadcast %400 : vector<1x8x1xf32> to vector<1x8x128xf32>
    %403 = vector.broadcast %401 : vector<1x1x128xf32> to vector<1x8x128xf32>
    %404 = arith.subf %402, %403 : vector<1x8x128xf32>
    %405 = vector.shape_cast %404 : vector<1x8x128xf32> to vector<8x128xf32>
    %406 = arith.mulf %405, %405 : vector<8x128xf32>
    %407 = arith.mulf %406, %327 : vector<8x128xf32>
    %408 = arith.mulf %407, %407 : vector<8x128xf32>
    %409 = arith.mulf %408, %408 : vector<8x128xf32>
    %410 = arith.addf %397, %409 : vector<8x128xf32>
    %c6_126 = arith.constant 6 : index
    %c0_127 = arith.constant 0 : index
    %411 = vector.load %arg3[%c6_126, %c0_127] : memref<32x8xf32, #tpu.memory_space<vmem>>, vector<1x8xf32>
    %c6_128 = arith.constant 6 : index
    %c0_129 = arith.constant 0 : index
    %412 = vector.load %arg4[%c6_128, %c0_129] : memref<32x128xf32, #tpu.memory_space<vmem>>, vector<1x128xf32>
    %413 = vector.shape_cast %411 : vector<1x8xf32> to vector<1x8x1xf32>
    %414 = vector.shape_cast %412 : vector<1x128xf32> to vector<1x1x128xf32>
    %415 = vector.broadcast %413 : vector<1x8x1xf32> to vector<1x8x128xf32>
    %416 = vector.broadcast %414 : vector<1x1x128xf32> to vector<1x8x128xf32>
    %417 = arith.subf %415, %416 : vector<1x8x128xf32>
    %418 = vector.shape_cast %417 : vector<1x8x128xf32> to vector<8x128xf32>
    %419 = arith.mulf %418, %418 : vector<8x128xf32>
    %420 = arith.mulf %419, %327 : vector<8x128xf32>
    %421 = arith.mulf %420, %420 : vector<8x128xf32>
    %422 = arith.mulf %421, %421 : vector<8x128xf32>
    %423 = arith.addf %410, %422 : vector<8x128xf32>
    %c7_130 = arith.constant 7 : index
    %c0_131 = arith.constant 0 : index
    %424 = vector.load %arg3[%c7_130, %c0_131] : memref<32x8xf32, #tpu.memory_space<vmem>>, vector<1x8xf32>
    %c7_132 = arith.constant 7 : index
    %c0_133 = arith.constant 0 : index
    %425 = vector.load %arg4[%c7_132, %c0_133] : memref<32x128xf32, #tpu.memory_space<vmem>>, vector<1x128xf32>
    %426 = vector.shape_cast %424 : vector<1x8xf32> to vector<1x8x1xf32>
    %427 = vector.shape_cast %425 : vector<1x128xf32> to vector<1x1x128xf32>
    %428 = vector.broadcast %426 : vector<1x8x1xf32> to vector<1x8x128xf32>
    %429 = vector.broadcast %427 : vector<1x1x128xf32> to vector<1x8x128xf32>
    %430 = arith.subf %428, %429 : vector<1x8x128xf32>
    %431 = vector.shape_cast %430 : vector<1x8x128xf32> to vector<8x128xf32>
    %432 = arith.mulf %431, %431 : vector<8x128xf32>
    %433 = arith.mulf %432, %327 : vector<8x128xf32>
    %434 = arith.mulf %433, %433 : vector<8x128xf32>
    %435 = arith.mulf %434, %434 : vector<8x128xf32>
    %436 = arith.addf %423, %435 : vector<8x128xf32>
    %c8_134 = arith.constant 8 : index
    %c0_135 = arith.constant 0 : index
    %437 = vector.load %arg3[%c8_134, %c0_135] : memref<32x8xf32, #tpu.memory_space<vmem>>, vector<1x8xf32>
    %c8_136 = arith.constant 8 : index
    %c0_137 = arith.constant 0 : index
    %438 = vector.load %arg4[%c8_136, %c0_137] : memref<32x128xf32, #tpu.memory_space<vmem>>, vector<1x128xf32>
    %439 = vector.shape_cast %437 : vector<1x8xf32> to vector<1x8x1xf32>
    %440 = vector.shape_cast %438 : vector<1x128xf32> to vector<1x1x128xf32>
    %441 = vector.broadcast %439 : vector<1x8x1xf32> to vector<1x8x128xf32>
    %442 = vector.broadcast %440 : vector<1x1x128xf32> to vector<1x8x128xf32>
    %443 = arith.subf %441, %442 : vector<1x8x128xf32>
    %444 = vector.shape_cast %443 : vector<1x8x128xf32> to vector<8x128xf32>
    %445 = arith.mulf %444, %444 : vector<8x128xf32>
    %446 = arith.mulf %445, %327 : vector<8x128xf32>
    %447 = arith.mulf %446, %446 : vector<8x128xf32>
    %448 = arith.mulf %447, %447 : vector<8x128xf32>
    %449 = arith.addf %436, %448 : vector<8x128xf32>
    %c9_138 = arith.constant 9 : index
    %c0_139 = arith.constant 0 : index
    %450 = vector.load %arg3[%c9_138, %c0_139] : memref<32x8xf32, #tpu.memory_space<vmem>>, vector<1x8xf32>
    %c9_140 = arith.constant 9 : index
    %c0_141 = arith.constant 0 : index
    %451 = vector.load %arg4[%c9_140, %c0_141] : memref<32x128xf32, #tpu.memory_space<vmem>>, vector<1x128xf32>
    %452 = vector.shape_cast %450 : vector<1x8xf32> to vector<1x8x1xf32>
    %453 = vector.shape_cast %451 : vector<1x128xf32> to vector<1x1x128xf32>
    %454 = vector.broadcast %452 : vector<1x8x1xf32> to vector<1x8x128xf32>
    %455 = vector.broadcast %453 : vector<1x1x128xf32> to vector<1x8x128xf32>
    %456 = arith.subf %454, %455 : vector<1x8x128xf32>
    %457 = vector.shape_cast %456 : vector<1x8x128xf32> to vector<8x128xf32>
    %458 = arith.mulf %457, %457 : vector<8x128xf32>
    %459 = arith.mulf %458, %327 : vector<8x128xf32>
    %460 = arith.mulf %459, %459 : vector<8x128xf32>
    %461 = arith.mulf %460, %460 : vector<8x128xf32>
    %462 = arith.addf %449, %461 : vector<8x128xf32>
    %c10_142 = arith.constant 10 : index
    %c0_143 = arith.constant 0 : index
    %463 = vector.load %arg3[%c10_142, %c0_143] : memref<32x8xf32, #tpu.memory_space<vmem>>, vector<1x8xf32>
    %c10_144 = arith.constant 10 : index
    %c0_145 = arith.constant 0 : index
    %464 = vector.load %arg4[%c10_144, %c0_145] : memref<32x128xf32, #tpu.memory_space<vmem>>, vector<1x128xf32>
    %465 = vector.shape_cast %463 : vector<1x8xf32> to vector<1x8x1xf32>
    %466 = vector.shape_cast %464 : vector<1x128xf32> to vector<1x1x128xf32>
    %467 = vector.broadcast %465 : vector<1x8x1xf32> to vector<1x8x128xf32>
    %468 = vector.broadcast %466 : vector<1x1x128xf32> to vector<1x8x128xf32>
    %469 = arith.subf %467, %468 : vector<1x8x128xf32>
    %470 = vector.shape_cast %469 : vector<1x8x128xf32> to vector<8x128xf32>
    %471 = arith.mulf %470, %470 : vector<8x128xf32>
    %472 = arith.mulf %471, %327 : vector<8x128xf32>
    %473 = arith.mulf %472, %472 : vector<8x128xf32>
    %474 = arith.mulf %473, %473 : vector<8x128xf32>
    %475 = arith.addf %462, %474 : vector<8x128xf32>
    %c11_146 = arith.constant 11 : index
    %c0_147 = arith.constant 0 : index
    %476 = vector.load %arg3[%c11_146, %c0_147] : memref<32x8xf32, #tpu.memory_space<vmem>>, vector<1x8xf32>
    %c11_148 = arith.constant 11 : index
    %c0_149 = arith.constant 0 : index
    %477 = vector.load %arg4[%c11_148, %c0_149] : memref<32x128xf32, #tpu.memory_space<vmem>>, vector<1x128xf32>
    %478 = vector.shape_cast %476 : vector<1x8xf32> to vector<1x8x1xf32>
    %479 = vector.shape_cast %477 : vector<1x128xf32> to vector<1x1x128xf32>
    %480 = vector.broadcast %478 : vector<1x8x1xf32> to vector<1x8x128xf32>
    %481 = vector.broadcast %479 : vector<1x1x128xf32> to vector<1x8x128xf32>
    %482 = arith.subf %480, %481 : vector<1x8x128xf32>
    %483 = vector.shape_cast %482 : vector<1x8x128xf32> to vector<8x128xf32>
    %484 = arith.mulf %483, %483 : vector<8x128xf32>
    %485 = arith.mulf %484, %327 : vector<8x128xf32>
    %486 = arith.mulf %485, %485 : vector<8x128xf32>
    %487 = arith.mulf %486, %486 : vector<8x128xf32>
    %488 = arith.addf %475, %487 : vector<8x128xf32>
    %c12_150 = arith.constant 12 : index
    %c0_151 = arith.constant 0 : index
    %489 = vector.load %arg3[%c12_150, %c0_151] : memref<32x8xf32, #tpu.memory_space<vmem>>, vector<1x8xf32>
    %c12_152 = arith.constant 12 : index
    %c0_153 = arith.constant 0 : index
    %490 = vector.load %arg4[%c12_152, %c0_153] : memref<32x128xf32, #tpu.memory_space<vmem>>, vector<1x128xf32>
    %491 = vector.shape_cast %489 : vector<1x8xf32> to vector<1x8x1xf32>
    %492 = vector.shape_cast %490 : vector<1x128xf32> to vector<1x1x128xf32>
    %493 = vector.broadcast %491 : vector<1x8x1xf32> to vector<1x8x128xf32>
    %494 = vector.broadcast %492 : vector<1x1x128xf32> to vector<1x8x128xf32>
    %495 = arith.subf %493, %494 : vector<1x8x128xf32>
    %496 = vector.shape_cast %495 : vector<1x8x128xf32> to vector<8x128xf32>
    %497 = arith.mulf %496, %496 : vector<8x128xf32>
    %498 = arith.mulf %497, %327 : vector<8x128xf32>
    %499 = arith.mulf %498, %498 : vector<8x128xf32>
    %500 = arith.mulf %499, %499 : vector<8x128xf32>
    %501 = arith.addf %488, %500 : vector<8x128xf32>
    %c13_154 = arith.constant 13 : index
    %c0_155 = arith.constant 0 : index
    %502 = vector.load %arg3[%c13_154, %c0_155] : memref<32x8xf32, #tpu.memory_space<vmem>>, vector<1x8xf32>
    %c13_156 = arith.constant 13 : index
    %c0_157 = arith.constant 0 : index
    %503 = vector.load %arg4[%c13_156, %c0_157] : memref<32x128xf32, #tpu.memory_space<vmem>>, vector<1x128xf32>
    %504 = vector.shape_cast %502 : vector<1x8xf32> to vector<1x8x1xf32>
    %505 = vector.shape_cast %503 : vector<1x128xf32> to vector<1x1x128xf32>
    %506 = vector.broadcast %504 : vector<1x8x1xf32> to vector<1x8x128xf32>
    %507 = vector.broadcast %505 : vector<1x1x128xf32> to vector<1x8x128xf32>
    %508 = arith.subf %506, %507 : vector<1x8x128xf32>
    %509 = vector.shape_cast %508 : vector<1x8x128xf32> to vector<8x128xf32>
    %510 = arith.mulf %509, %509 : vector<8x128xf32>
    %511 = arith.mulf %510, %327 : vector<8x128xf32>
    %512 = arith.mulf %511, %511 : vector<8x128xf32>
    %513 = arith.mulf %512, %512 : vector<8x128xf32>
    %514 = arith.addf %501, %513 : vector<8x128xf32>
    %c14_158 = arith.constant 14 : index
    %c0_159 = arith.constant 0 : index
    %515 = vector.load %arg3[%c14_158, %c0_159] : memref<32x8xf32, #tpu.memory_space<vmem>>, vector<1x8xf32>
    %c14_160 = arith.constant 14 : index
    %c0_161 = arith.constant 0 : index
    %516 = vector.load %arg4[%c14_160, %c0_161] : memref<32x128xf32, #tpu.memory_space<vmem>>, vector<1x128xf32>
    %517 = vector.shape_cast %515 : vector<1x8xf32> to vector<1x8x1xf32>
    %518 = vector.shape_cast %516 : vector<1x128xf32> to vector<1x1x128xf32>
    %519 = vector.broadcast %517 : vector<1x8x1xf32> to vector<1x8x128xf32>
    %520 = vector.broadcast %518 : vector<1x1x128xf32> to vector<1x8x128xf32>
    %521 = arith.subf %519, %520 : vector<1x8x128xf32>
    %522 = vector.shape_cast %521 : vector<1x8x128xf32> to vector<8x128xf32>
    %523 = arith.mulf %522, %522 : vector<8x128xf32>
    %524 = arith.mulf %523, %327 : vector<8x128xf32>
    %525 = arith.mulf %524, %524 : vector<8x128xf32>
    %526 = arith.mulf %525, %525 : vector<8x128xf32>
    %527 = arith.addf %514, %526 : vector<8x128xf32>
    %c15_162 = arith.constant 15 : index
    %c0_163 = arith.constant 0 : index
    %528 = vector.load %arg3[%c15_162, %c0_163] : memref<32x8xf32, #tpu.memory_space<vmem>>, vector<1x8xf32>
    %c15_164 = arith.constant 15 : index
    %c0_165 = arith.constant 0 : index
    %529 = vector.load %arg4[%c15_164, %c0_165] : memref<32x128xf32, #tpu.memory_space<vmem>>, vector<1x128xf32>
    %530 = vector.shape_cast %528 : vector<1x8xf32> to vector<1x8x1xf32>
    %531 = vector.shape_cast %529 : vector<1x128xf32> to vector<1x1x128xf32>
    %532 = vector.broadcast %530 : vector<1x8x1xf32> to vector<1x8x128xf32>
    %533 = vector.broadcast %531 : vector<1x1x128xf32> to vector<1x8x128xf32>
    %534 = arith.subf %532, %533 : vector<1x8x128xf32>
    %535 = vector.shape_cast %534 : vector<1x8x128xf32> to vector<8x128xf32>
    %536 = arith.mulf %535, %535 : vector<8x128xf32>
    %537 = arith.mulf %536, %327 : vector<8x128xf32>
    %538 = arith.mulf %537, %537 : vector<8x128xf32>
    %539 = arith.mulf %538, %538 : vector<8x128xf32>
    %540 = arith.addf %527, %539 : vector<8x128xf32>
    %c16_166 = arith.constant 16 : index
    %c0_167 = arith.constant 0 : index
    %541 = vector.load %arg3[%c16_166, %c0_167] : memref<32x8xf32, #tpu.memory_space<vmem>>, vector<1x8xf32>
    %c16_168 = arith.constant 16 : index
    %c0_169 = arith.constant 0 : index
    %542 = vector.load %arg4[%c16_168, %c0_169] : memref<32x128xf32, #tpu.memory_space<vmem>>, vector<1x128xf32>
    %543 = vector.shape_cast %541 : vector<1x8xf32> to vector<1x8x1xf32>
    %544 = vector.shape_cast %542 : vector<1x128xf32> to vector<1x1x128xf32>
    %545 = vector.broadcast %543 : vector<1x8x1xf32> to vector<1x8x128xf32>
    %546 = vector.broadcast %544 : vector<1x1x128xf32> to vector<1x8x128xf32>
    %547 = arith.subf %545, %546 : vector<1x8x128xf32>
    %548 = vector.shape_cast %547 : vector<1x8x128xf32> to vector<8x128xf32>
    %549 = arith.mulf %548, %548 : vector<8x128xf32>
    %550 = arith.mulf %549, %327 : vector<8x128xf32>
    %551 = arith.mulf %550, %550 : vector<8x128xf32>
    %552 = arith.mulf %551, %551 : vector<8x128xf32>
    %553 = arith.addf %540, %552 : vector<8x128xf32>
    %c17_170 = arith.constant 17 : index
    %c0_171 = arith.constant 0 : index
    %554 = vector.load %arg3[%c17_170, %c0_171] : memref<32x8xf32, #tpu.memory_space<vmem>>, vector<1x8xf32>
    %c17_172 = arith.constant 17 : index
    %c0_173 = arith.constant 0 : index
    %555 = vector.load %arg4[%c17_172, %c0_173] : memref<32x128xf32, #tpu.memory_space<vmem>>, vector<1x128xf32>
    %556 = vector.shape_cast %554 : vector<1x8xf32> to vector<1x8x1xf32>
    %557 = vector.shape_cast %555 : vector<1x128xf32> to vector<1x1x128xf32>
    %558 = vector.broadcast %556 : vector<1x8x1xf32> to vector<1x8x128xf32>
    %559 = vector.broadcast %557 : vector<1x1x128xf32> to vector<1x8x128xf32>
    %560 = arith.subf %558, %559 : vector<1x8x128xf32>
    %561 = vector.shape_cast %560 : vector<1x8x128xf32> to vector<8x128xf32>
    %562 = arith.mulf %561, %561 : vector<8x128xf32>
    %563 = arith.mulf %562, %327 : vector<8x128xf32>
    %564 = arith.mulf %563, %563 : vector<8x128xf32>
    %565 = arith.mulf %564, %564 : vector<8x128xf32>
    %566 = arith.addf %553, %565 : vector<8x128xf32>
    %c18_174 = arith.constant 18 : index
    %c0_175 = arith.constant 0 : index
    %567 = vector.load %arg3[%c18_174, %c0_175] : memref<32x8xf32, #tpu.memory_space<vmem>>, vector<1x8xf32>
    %c18_176 = arith.constant 18 : index
    %c0_177 = arith.constant 0 : index
    %568 = vector.load %arg4[%c18_176, %c0_177] : memref<32x128xf32, #tpu.memory_space<vmem>>, vector<1x128xf32>
    %569 = vector.shape_cast %567 : vector<1x8xf32> to vector<1x8x1xf32>
    %570 = vector.shape_cast %568 : vector<1x128xf32> to vector<1x1x128xf32>
    %571 = vector.broadcast %569 : vector<1x8x1xf32> to vector<1x8x128xf32>
    %572 = vector.broadcast %570 : vector<1x1x128xf32> to vector<1x8x128xf32>
    %573 = arith.subf %571, %572 : vector<1x8x128xf32>
    %574 = vector.shape_cast %573 : vector<1x8x128xf32> to vector<8x128xf32>
    %575 = arith.mulf %574, %574 : vector<8x128xf32>
    %576 = arith.mulf %575, %327 : vector<8x128xf32>
    %577 = arith.mulf %576, %576 : vector<8x128xf32>
    %578 = arith.mulf %577, %577 : vector<8x128xf32>
    %579 = arith.addf %566, %578 : vector<8x128xf32>
    %c19_178 = arith.constant 19 : index
    %c0_179 = arith.constant 0 : index
    %580 = vector.load %arg3[%c19_178, %c0_179] : memref<32x8xf32, #tpu.memory_space<vmem>>, vector<1x8xf32>
    %c19_180 = arith.constant 19 : index
    %c0_181 = arith.constant 0 : index
    %581 = vector.load %arg4[%c19_180, %c0_181] : memref<32x128xf32, #tpu.memory_space<vmem>>, vector<1x128xf32>
    %582 = vector.shape_cast %580 : vector<1x8xf32> to vector<1x8x1xf32>
    %583 = vector.shape_cast %581 : vector<1x128xf32> to vector<1x1x128xf32>
    %584 = vector.broadcast %582 : vector<1x8x1xf32> to vector<1x8x128xf32>
    %585 = vector.broadcast %583 : vector<1x1x128xf32> to vector<1x8x128xf32>
    %586 = arith.subf %584, %585 : vector<1x8x128xf32>
    %587 = vector.shape_cast %586 : vector<1x8x128xf32> to vector<8x128xf32>
    %588 = arith.mulf %587, %587 : vector<8x128xf32>
    %589 = arith.mulf %588, %327 : vector<8x128xf32>
    %590 = arith.mulf %589, %589 : vector<8x128xf32>
    %591 = arith.mulf %590, %590 : vector<8x128xf32>
    %592 = arith.addf %579, %591 : vector<8x128xf32>
    %c20_182 = arith.constant 20 : index
    %c0_183 = arith.constant 0 : index
    %593 = vector.load %arg3[%c20_182, %c0_183] : memref<32x8xf32, #tpu.memory_space<vmem>>, vector<1x8xf32>
    %c20_184 = arith.constant 20 : index
    %c0_185 = arith.constant 0 : index
    %594 = vector.load %arg4[%c20_184, %c0_185] : memref<32x128xf32, #tpu.memory_space<vmem>>, vector<1x128xf32>
    %595 = vector.shape_cast %593 : vector<1x8xf32> to vector<1x8x1xf32>
    %596 = vector.shape_cast %594 : vector<1x128xf32> to vector<1x1x128xf32>
    %597 = vector.broadcast %595 : vector<1x8x1xf32> to vector<1x8x128xf32>
    %598 = vector.broadcast %596 : vector<1x1x128xf32> to vector<1x8x128xf32>
    %599 = arith.subf %597, %598 : vector<1x8x128xf32>
    %600 = vector.shape_cast %599 : vector<1x8x128xf32> to vector<8x128xf32>
    %601 = arith.mulf %600, %600 : vector<8x128xf32>
    %602 = arith.mulf %601, %327 : vector<8x128xf32>
    %603 = arith.mulf %602, %602 : vector<8x128xf32>
    %604 = arith.mulf %603, %603 : vector<8x128xf32>
    %605 = arith.addf %592, %604 : vector<8x128xf32>
    %c21_186 = arith.constant 21 : index
    %c0_187 = arith.constant 0 : index
    %606 = vector.load %arg3[%c21_186, %c0_187] : memref<32x8xf32, #tpu.memory_space<vmem>>, vector<1x8xf32>
    %c21_188 = arith.constant 21 : index
    %c0_189 = arith.constant 0 : index
    %607 = vector.load %arg4[%c21_188, %c0_189] : memref<32x128xf32, #tpu.memory_space<vmem>>, vector<1x128xf32>
    %608 = vector.shape_cast %606 : vector<1x8xf32> to vector<1x8x1xf32>
    %609 = vector.shape_cast %607 : vector<1x128xf32> to vector<1x1x128xf32>
    %610 = vector.broadcast %608 : vector<1x8x1xf32> to vector<1x8x128xf32>
    %611 = vector.broadcast %609 : vector<1x1x128xf32> to vector<1x8x128xf32>
    %612 = arith.subf %610, %611 : vector<1x8x128xf32>
    %613 = vector.shape_cast %612 : vector<1x8x128xf32> to vector<8x128xf32>
    %614 = arith.mulf %613, %613 : vector<8x128xf32>
    %615 = arith.mulf %614, %327 : vector<8x128xf32>
    %616 = arith.mulf %615, %615 : vector<8x128xf32>
    %617 = arith.mulf %616, %616 : vector<8x128xf32>
    %618 = arith.addf %605, %617 : vector<8x128xf32>
    %c22_190 = arith.constant 22 : index
    %c0_191 = arith.constant 0 : index
    %619 = vector.load %arg3[%c22_190, %c0_191] : memref<32x8xf32, #tpu.memory_space<vmem>>, vector<1x8xf32>
    %c22_192 = arith.constant 22 : index
    %c0_193 = arith.constant 0 : index
    %620 = vector.load %arg4[%c22_192, %c0_193] : memref<32x128xf32, #tpu.memory_space<vmem>>, vector<1x128xf32>
    %621 = vector.shape_cast %619 : vector<1x8xf32> to vector<1x8x1xf32>
    %622 = vector.shape_cast %620 : vector<1x128xf32> to vector<1x1x128xf32>
    %623 = vector.broadcast %621 : vector<1x8x1xf32> to vector<1x8x128xf32>
    %624 = vector.broadcast %622 : vector<1x1x128xf32> to vector<1x8x128xf32>
    %625 = arith.subf %623, %624 : vector<1x8x128xf32>
    %626 = vector.shape_cast %625 : vector<1x8x128xf32> to vector<8x128xf32>
    %627 = arith.mulf %626, %626 : vector<8x128xf32>
    %628 = arith.mulf %627, %327 : vector<8x128xf32>
    %629 = arith.mulf %628, %628 : vector<8x128xf32>
    %630 = arith.mulf %629, %629 : vector<8x128xf32>
    %631 = arith.addf %618, %630 : vector<8x128xf32>
    %c23_194 = arith.constant 23 : index
    %c0_195 = arith.constant 0 : index
    %632 = vector.load %arg3[%c23_194, %c0_195] : memref<32x8xf32, #tpu.memory_space<vmem>>, vector<1x8xf32>
    %c23_196 = arith.constant 23 : index
    %c0_197 = arith.constant 0 : index
    %633 = vector.load %arg4[%c23_196, %c0_197] : memref<32x128xf32, #tpu.memory_space<vmem>>, vector<1x128xf32>
    %634 = vector.shape_cast %632 : vector<1x8xf32> to vector<1x8x1xf32>
    %635 = vector.shape_cast %633 : vector<1x128xf32> to vector<1x1x128xf32>
    %636 = vector.broadcast %634 : vector<1x8x1xf32> to vector<1x8x128xf32>
    %637 = vector.broadcast %635 : vector<1x1x128xf32> to vector<1x8x128xf32>
    %638 = arith.subf %636, %637 : vector<1x8x128xf32>
    %639 = vector.shape_cast %638 : vector<1x8x128xf32> to vector<8x128xf32>
    %640 = arith.mulf %639, %639 : vector<8x128xf32>
    %641 = arith.mulf %640, %327 : vector<8x128xf32>
    %642 = arith.mulf %641, %641 : vector<8x128xf32>
    %643 = arith.mulf %642, %642 : vector<8x128xf32>
    %644 = arith.addf %631, %643 : vector<8x128xf32>
    %c24_198 = arith.constant 24 : index
    %c0_199 = arith.constant 0 : index
    %645 = vector.load %arg3[%c24_198, %c0_199] : memref<32x8xf32, #tpu.memory_space<vmem>>, vector<1x8xf32>
    %c24_200 = arith.constant 24 : index
    %c0_201 = arith.constant 0 : index
    %646 = vector.load %arg4[%c24_200, %c0_201] : memref<32x128xf32, #tpu.memory_space<vmem>>, vector<1x128xf32>
    %647 = vector.shape_cast %645 : vector<1x8xf32> to vector<1x8x1xf32>
    %648 = vector.shape_cast %646 : vector<1x128xf32> to vector<1x1x128xf32>
    %649 = vector.broadcast %647 : vector<1x8x1xf32> to vector<1x8x128xf32>
    %650 = vector.broadcast %648 : vector<1x1x128xf32> to vector<1x8x128xf32>
    %651 = arith.subf %649, %650 : vector<1x8x128xf32>
    %652 = vector.shape_cast %651 : vector<1x8x128xf32> to vector<8x128xf32>
    %653 = arith.mulf %652, %652 : vector<8x128xf32>
    %654 = arith.mulf %653, %327 : vector<8x128xf32>
    %655 = arith.mulf %654, %654 : vector<8x128xf32>
    %656 = arith.mulf %655, %655 : vector<8x128xf32>
    %657 = arith.addf %644, %656 : vector<8x128xf32>
    %c25_202 = arith.constant 25 : index
    %c0_203 = arith.constant 0 : index
    %658 = vector.load %arg3[%c25_202, %c0_203] : memref<32x8xf32, #tpu.memory_space<vmem>>, vector<1x8xf32>
    %c25_204 = arith.constant 25 : index
    %c0_205 = arith.constant 0 : index
    %659 = vector.load %arg4[%c25_204, %c0_205] : memref<32x128xf32, #tpu.memory_space<vmem>>, vector<1x128xf32>
    %660 = vector.shape_cast %658 : vector<1x8xf32> to vector<1x8x1xf32>
    %661 = vector.shape_cast %659 : vector<1x128xf32> to vector<1x1x128xf32>
    %662 = vector.broadcast %660 : vector<1x8x1xf32> to vector<1x8x128xf32>
    %663 = vector.broadcast %661 : vector<1x1x128xf32> to vector<1x8x128xf32>
    %664 = arith.subf %662, %663 : vector<1x8x128xf32>
    %665 = vector.shape_cast %664 : vector<1x8x128xf32> to vector<8x128xf32>
    %666 = arith.mulf %665, %665 : vector<8x128xf32>
    %667 = arith.mulf %666, %327 : vector<8x128xf32>
    %668 = arith.mulf %667, %667 : vector<8x128xf32>
    %669 = arith.mulf %668, %668 : vector<8x128xf32>
    %670 = arith.addf %657, %669 : vector<8x128xf32>
    %c26_206 = arith.constant 26 : index
    %c0_207 = arith.constant 0 : index
    %671 = vector.load %arg3[%c26_206, %c0_207] : memref<32x8xf32, #tpu.memory_space<vmem>>, vector<1x8xf32>
    %c26_208 = arith.constant 26 : index
    %c0_209 = arith.constant 0 : index
    %672 = vector.load %arg4[%c26_208, %c0_209] : memref<32x128xf32, #tpu.memory_space<vmem>>, vector<1x128xf32>
    %673 = vector.shape_cast %671 : vector<1x8xf32> to vector<1x8x1xf32>
    %674 = vector.shape_cast %672 : vector<1x128xf32> to vector<1x1x128xf32>
    %675 = vector.broadcast %673 : vector<1x8x1xf32> to vector<1x8x128xf32>
    %676 = vector.broadcast %674 : vector<1x1x128xf32> to vector<1x8x128xf32>
    %677 = arith.subf %675, %676 : vector<1x8x128xf32>
    %678 = vector.shape_cast %677 : vector<1x8x128xf32> to vector<8x128xf32>
    %679 = arith.mulf %678, %678 : vector<8x128xf32>
    %680 = arith.mulf %679, %327 : vector<8x128xf32>
    %681 = arith.mulf %680, %680 : vector<8x128xf32>
    %682 = arith.mulf %681, %681 : vector<8x128xf32>
    %683 = arith.addf %670, %682 : vector<8x128xf32>
    %c27_210 = arith.constant 27 : index
    %c0_211 = arith.constant 0 : index
    %684 = vector.load %arg3[%c27_210, %c0_211] : memref<32x8xf32, #tpu.memory_space<vmem>>, vector<1x8xf32>
    %c27_212 = arith.constant 27 : index
    %c0_213 = arith.constant 0 : index
    %685 = vector.load %arg4[%c27_212, %c0_213] : memref<32x128xf32, #tpu.memory_space<vmem>>, vector<1x128xf32>
    %686 = vector.shape_cast %684 : vector<1x8xf32> to vector<1x8x1xf32>
    %687 = vector.shape_cast %685 : vector<1x128xf32> to vector<1x1x128xf32>
    %688 = vector.broadcast %686 : vector<1x8x1xf32> to vector<1x8x128xf32>
    %689 = vector.broadcast %687 : vector<1x1x128xf32> to vector<1x8x128xf32>
    %690 = arith.subf %688, %689 : vector<1x8x128xf32>
    %691 = vector.shape_cast %690 : vector<1x8x128xf32> to vector<8x128xf32>
    %692 = arith.mulf %691, %691 : vector<8x128xf32>
    %693 = arith.mulf %692, %327 : vector<8x128xf32>
    %694 = arith.mulf %693, %693 : vector<8x128xf32>
    %695 = arith.mulf %694, %694 : vector<8x128xf32>
    %696 = arith.addf %683, %695 : vector<8x128xf32>
    %c28_214 = arith.constant 28 : index
    %c0_215 = arith.constant 0 : index
    %697 = vector.load %arg3[%c28_214, %c0_215] : memref<32x8xf32, #tpu.memory_space<vmem>>, vector<1x8xf32>
    %c28_216 = arith.constant 28 : index
    %c0_217 = arith.constant 0 : index
    %698 = vector.load %arg4[%c28_216, %c0_217] : memref<32x128xf32, #tpu.memory_space<vmem>>, vector<1x128xf32>
    %699 = vector.shape_cast %697 : vector<1x8xf32> to vector<1x8x1xf32>
    %700 = vector.shape_cast %698 : vector<1x128xf32> to vector<1x1x128xf32>
    %701 = vector.broadcast %699 : vector<1x8x1xf32> to vector<1x8x128xf32>
    %702 = vector.broadcast %700 : vector<1x1x128xf32> to vector<1x8x128xf32>
    %703 = arith.subf %701, %702 : vector<1x8x128xf32>
    %704 = vector.shape_cast %703 : vector<1x8x128xf32> to vector<8x128xf32>
    %705 = arith.mulf %704, %704 : vector<8x128xf32>
    %706 = arith.mulf %705, %327 : vector<8x128xf32>
    %707 = arith.mulf %706, %706 : vector<8x128xf32>
    %708 = arith.mulf %707, %707 : vector<8x128xf32>
    %709 = arith.addf %696, %708 : vector<8x128xf32>
    %c29_218 = arith.constant 29 : index
    %c0_219 = arith.constant 0 : index
    %710 = vector.load %arg3[%c29_218, %c0_219] : memref<32x8xf32, #tpu.memory_space<vmem>>, vector<1x8xf32>
    %c29_220 = arith.constant 29 : index
    %c0_221 = arith.constant 0 : index
    %711 = vector.load %arg4[%c29_220, %c0_221] : memref<32x128xf32, #tpu.memory_space<vmem>>, vector<1x128xf32>
    %712 = vector.shape_cast %710 : vector<1x8xf32> to vector<1x8x1xf32>
    %713 = vector.shape_cast %711 : vector<1x128xf32> to vector<1x1x128xf32>
    %714 = vector.broadcast %712 : vector<1x8x1xf32> to vector<1x8x128xf32>
    %715 = vector.broadcast %713 : vector<1x1x128xf32> to vector<1x8x128xf32>
    %716 = arith.subf %714, %715 : vector<1x8x128xf32>
    %717 = vector.shape_cast %716 : vector<1x8x128xf32> to vector<8x128xf32>
    %718 = arith.mulf %717, %717 : vector<8x128xf32>
    %719 = arith.mulf %718, %327 : vector<8x128xf32>
    %720 = arith.mulf %719, %719 : vector<8x128xf32>
    %721 = arith.mulf %720, %720 : vector<8x128xf32>
    %722 = arith.addf %709, %721 : vector<8x128xf32>
    %c30_222 = arith.constant 30 : index
    %c0_223 = arith.constant 0 : index
    %723 = vector.load %arg3[%c30_222, %c0_223] : memref<32x8xf32, #tpu.memory_space<vmem>>, vector<1x8xf32>
    %c30_224 = arith.constant 30 : index
    %c0_225 = arith.constant 0 : index
    %724 = vector.load %arg4[%c30_224, %c0_225] : memref<32x128xf32, #tpu.memory_space<vmem>>, vector<1x128xf32>
    %725 = vector.shape_cast %723 : vector<1x8xf32> to vector<1x8x1xf32>
    %726 = vector.shape_cast %724 : vector<1x128xf32> to vector<1x1x128xf32>
    %727 = vector.broadcast %725 : vector<1x8x1xf32> to vector<1x8x128xf32>
    %728 = vector.broadcast %726 : vector<1x1x128xf32> to vector<1x8x128xf32>
    %729 = arith.subf %727, %728 : vector<1x8x128xf32>
    %730 = vector.shape_cast %729 : vector<1x8x128xf32> to vector<8x128xf32>
    %731 = arith.mulf %730, %730 : vector<8x128xf32>
    %732 = arith.mulf %731, %327 : vector<8x128xf32>
    %733 = arith.mulf %732, %732 : vector<8x128xf32>
    %734 = arith.mulf %733, %733 : vector<8x128xf32>
    %735 = arith.addf %722, %734 : vector<8x128xf32>
    %c31_226 = arith.constant 31 : index
    %c0_227 = arith.constant 0 : index
    %736 = vector.load %arg3[%c31_226, %c0_227] : memref<32x8xf32, #tpu.memory_space<vmem>>, vector<1x8xf32>
    %c31_228 = arith.constant 31 : index
    %c0_229 = arith.constant 0 : index
    %737 = vector.load %arg4[%c31_228, %c0_229] : memref<32x128xf32, #tpu.memory_space<vmem>>, vector<1x128xf32>
    %738 = vector.shape_cast %736 : vector<1x8xf32> to vector<1x8x1xf32>
    %739 = vector.shape_cast %737 : vector<1x128xf32> to vector<1x1x128xf32>
    %740 = vector.broadcast %738 : vector<1x8x1xf32> to vector<1x8x128xf32>
    %741 = vector.broadcast %739 : vector<1x1x128xf32> to vector<1x8x128xf32>
    %742 = arith.subf %740, %741 : vector<1x8x128xf32>
    %743 = vector.shape_cast %742 : vector<1x8x128xf32> to vector<8x128xf32>
    %744 = arith.mulf %743, %743 : vector<8x128xf32>
    %745 = arith.mulf %744, %327 : vector<8x128xf32>
    %746 = arith.mulf %745, %745 : vector<8x128xf32>
    %747 = arith.mulf %746, %746 : vector<8x128xf32>
    %748 = arith.addf %735, %747 : vector<8x128xf32>
    %c0_230 = arith.constant 0 : index
    %c0_231 = arith.constant 0 : index
    %749 = vector.load %arg7[%c0_230, %c0_231] : memref<8x128xf32, #tpu.memory_space<vmem>>, vector<8x128xf32>
    tpu.vector_store %arg7[%c0_230, %c0_231], %323 {strides = array<i32>} : memref<8x128xf32, #tpu.memory_space<vmem>>, vector<8x128xf32>,
    %c0_232 = arith.constant 0 : index
    %c0_233 = arith.constant 0 : index
    %750 = vector.load %arg8[%c0_232, %c0_233] : memref<8x128xf32, #tpu.memory_space<vmem>>, vector<8x128xf32>
    tpu.vector_store %arg8[%c0_232, %c0_233], %748 {strides = array<i32>} : memref<8x128xf32, #tpu.memory_space<vmem>>, vector<8x128xf32>,
    %c0_i32_234 = arith.constant 0 : i32
    %751 = arith.cmpi eq, %arg2, %c0_i32_234 : i32
    %752 = arith.extui %751 : i1 to i32
    %c0_i32_235 = arith.constant 0 : i32
    %753 = arith.cmpi ne, %752, %c0_i32_235 : i32
    scf.if %753 {
      %754 = math.sqrt %748 : vector<8x128xf32>
      %755 = math.sqrt %754 : vector<8x128xf32>
      %756 = math.sqrt %755 : vector<8x128xf32>
      %757 = math.sqrt %323 : vector<8x128xf32>
      %758 = arith.mulf %757, %756 : vector<8x128xf32>
      %c0_236 = arith.constant 0 : index
      %c0_237 = arith.constant 0 : index
      %759 = vector.load %arg5[%c0_236, %c0_237] : memref<1x128xf32, #tpu.memory_space<vmem>>, vector<1x128xf32>
      %760 = vector.broadcast %759 : vector<1x128xf32> to vector<8x128xf32>
      %761 = arith.addf %758, %760 : vector<8x128xf32>
      %c0_238 = arith.constant 0 : index
      %c0_239 = arith.constant 0 : index
      %762 = vector.load %arg6[%c0_238, %c0_239] : memref<8x128xf32, #tpu.memory_space<vmem>>, vector<8x128xf32>
      tpu.vector_store %arg6[%c0_238, %c0_239], %761 {strides = array<i32>} : memref<8x128xf32, #tpu.memory_space<vmem>>, vector<8x128xf32>,
    } else {
    }
    return
  }
  func.func @transform_0(%arg0: i32, %arg1: i32, %arg2: i32) -> (i32, i32) {
    %c0_i32 = arith.constant 0 : i32
    return %arg2, %arg0 : i32, i32
  }
  func.func @transform_1(%arg0: i32, %arg1: i32, %arg2: i32) -> (i32, i32) {
    %c0_i32 = arith.constant 0 : i32
    return %arg2, %arg1 : i32, i32
  }
  func.func @transform_2(%arg0: i32, %arg1: i32, %arg2: i32) -> (i32, i32) {
    %c0_i32 = arith.constant 0 : i32
    %c0_i32_0 = arith.constant 0 : i32
    return %c0_i32, %arg1 : i32, i32
  }
  func.func @transform_3(%arg0: i32, %arg1: i32, %arg2: i32) -> (i32, i32) {
    %c0_i32 = arith.constant 0 : i32
    return %arg0, %arg1 : i32, i32
  }
}

</mosaic_0001>

<llo_original>
// kernel: tpu_custom_call.1
$region0: #{tpu_custom_call.1}
  #allocation0 [shape = 'u32[]', space=smem, size = 0x4, offset = 0x4, fixed_abs, tag = 'smem constant byte address 0x4 - core index']
  #allocation1 [shape = 'u32[144,128]{1,0:T(1,128)}', space=vmem, size = 0x12000, scoped, tag = 'internal scratch']
  #allocation2 [shape = 'f32[8,128]{1,0:T(8,128)}', space=vmem, size = 0x1000, scoped, tag = 'scratch operand']
  #allocation3 [shape = 'f32[8,128]{1,0:T(8,128)}', space=vmem, size = 0x1000, scoped, tag = 'scratch operand']
  %s0 = inlined_call_operand.vmem [shape: f32[32,8], index: 0, kind: input, shape index: {}]
  %s1 = inlined_call_operand.hbm [shape: f32[32,256], index: 1, kind: input, shape index: {}]
  %s2 = inlined_call_operand.vmem [shape: f32[1,256], index: 2, kind: input, shape index: {}]
  %s3 = inlined_call_operand.hbm [shape: f32[8,256], index: 3, kind: output, shape index: {}]
  %s4 = sld [smem:[#allocation0]]
  $region57: #{tpu_custom_call.1} parent=0
    _
  %s6 = ssub.s32 1, %s4
  %s7 = scalar_select 0, %s6, %s4
  $region1: #{tpu_custom_call.1} parent=0
    #allocation4 [shape = 'u8[32768]{0}', space=vmem, size = 0x8000, scoped, tag = 'input window, operand 1']
    #allocation5 [shape = 's32[2]{0}', space=sflag, size = 0x8, scoped, tag = 'scoped memory for tpu_custom_call.1']
    #allocation6 [shape = 's32[2]{0}', space=sflag, size = 0x8, scoped, tag = 'scoped memory for tpu_custom_call.1']
    #allocation7 [shape = 'u8[8192]{0}', space=vmem, size = 0x2000, scoped, tag = 'output window, operand 0']
    %8 = vsyncpa [#allocation5], 0
    %s9 = scalar_lea.sflag [#allocation5], 1
    %10 = vsyncpa %s9, 0
    %11 = vsyncpa [#allocation6], 0
    %s12 = scalar_lea.sflag [#allocation6], 1
    %13 = vsyncpa %s12, 0
    loop: start=0, step=1, limit=4
    $region2: #{tpu_custom_call.1} parent=1 // loop_pre_header
      _
    $region3: #{tpu_custom_call.1} parent=1 // loop_header
      %s15 = sphi 0, %s19
      %p16 = scmp.ge.s32.totalorder %s15, 4
      %s22 = sphi 0, %s41
      %s23 = sphi 0, %s37
      %s24 = sphi 0, %s33
      %s25 = sphi 0, %s22
      %s26 = sphi 0, %s23
      %s27 = sphi 0, %s24
      %s28 = sphi 0, %s25
      %s29 = sphi 0, %s26
      %s30 = sphi 0, %s27
      %s46 = sphi 0, %s48
      %s49 = sphi 0, %s46
      %s50 = sphi 0, %s49
      %s66 = sphi 0, %s50
      %s74 = sphi 0, %s76
      %s77 = sphi 0, %s74
      %s78 = sphi 0, %s77
      %s94 = sphi 0, %s78
      %s100 = sphi 0, %s102
      %s103 = sphi 0, %s100
      %s104 = sphi 0, %s103
      %s120 = sphi 0, %s104
      %s128 = sphi 0, %s130
      %s131 = sphi 0, %s128
      %s132 = sphi 0, %s131
      %s148 = sphi 0, %s132
    $region4: #{tpu_custom_call.1} parent=1 // loop_header_branch
      %18 = sbr.rel (%p16) target = $region8
    $region5: #{tpu_custom_call.1} parent=1 // loop_body
      %s20 = ssub.s32 %s15, 1
      %s21 = ssub.s32 %s15, 2
      %s31 = sadd.s32 1, %s24
      %p32 = scmp.ge.s32.totalorder %s31, 1
      %s33 = scalar_select %p32, 0, %s31
      %s34 = sadd.s32 1, %s23
      %s35 = scalar_select %p32, %s34, %s23
      %p36 = scmp.ge.s32.totalorder %s35, 2
      %s37 = scalar_select %p36, 0, %s35
      %s38 = sadd.s32 1, %s22
      %s39 = scalar_select %p36, %s38, %s22
      %p40 = scmp.ge.s32.totalorder %s39, 1
      %s41 = scalar_select %p40, 0, %s39
      %s42 = ssub.s32 %s24, %s33
      %s43 = ssub.s32 %s22, %s41
      %s44 = sor.u32 %s42, %s43
      %p45 = scmp.eq.s32.totalorder %s44, 0
      %s47 = sadd.s32 %s46, 1
      %s48 = scalar_select %p45, %s46, %s47
      %p51 = pneg %p45
      %p52 = scmp.eq.s32.totalorder %s15, 1
      %p53 = por %p51, %p52
      %p54 = scmp.ne.s32.totalorder %s46, %s49
      %p55 = scmp.eq.s32.totalorder %s15, 0
      %p56 = por %p54, %p55
      %p57 = scmp.ne.s32.totalorder %s46, %s49
      %p58 = scmp.eq.s32.totalorder %s20, 1
      %p59 = por %p57, %p58
      %p60 = scmp.ne.s32.totalorder %s49, %s50
      %p61 = scmp.eq.s32.totalorder %s20, 0
      %p62 = por %p60, %p61
      %p63 = scmp.ne.s32.totalorder %s49, %s50
      %p64 = scmp.eq.s32.totalorder %s21, 1
      %p65 = por %p63, %p64
      %p67 = scmp.ne.s32.totalorder %s50, %s66
      %p68 = scmp.eq.s32.totalorder %s21, 0
      %p69 = por %p67, %p68
      %s70 = ssub.s32 %s24, %s33
      %s71 = ssub.s32 %s23, %s37
      %s72 = sor.u32 %s70, %s71
      %p73 = scmp.eq.s32.totalorder %s72, 0
      %s75 = sadd.s32 %s74, 1
      %s76 = scalar_select %p73, %s74, %s75
      %p79 = pneg %p73
      %p80 = scmp.eq.s32.totalorder %s15, 1
      %p81 = por %p79, %p80
      %p82 = scmp.ne.s32.totalorder %s74, %s77
      %p83 = scmp.eq.s32.totalorder %s15, 0
      %p84 = por %p82, %p83
      %p85 = scmp.ne.s32.totalorder %s74, %s77
      %p86 = scmp.eq.s32.totalorder %s20, 1
      %p87 = por %p85, %p86
      %p88 = scmp.ne.s32.totalorder %s77, %s78
      %p89 = scmp.eq.s32.totalorder %s20, 0
      %p90 = por %p88, %p89
      %p91 = scmp.ne.s32.totalorder %s77, %s78
      %p92 = scmp.eq.s32.totalorder %s21, 1
      %p93 = por %p91, %p92
      %p95 = scmp.ne.s32.totalorder %s78, %s94
      %p96 = scmp.eq.s32.totalorder %s21, 0
      %p97 = por %p95, %p96
      %s98 = ssub.s32 %s23, %s37
      %p99 = scmp.eq.s32.totalorder %s98, 0
      %s101 = sadd.s32 %s100, 1
      %s102 = scalar_select %p99, %s100, %s101
      %p105 = pneg %p99
      %p106 = scmp.eq.s32.totalorder %s15, 1
      %p107 = por %p105, %p106
      %p108 = scmp.ne.s32.totalorder %s100, %s103
      %p109 = scmp.eq.s32.totalorder %s15, 0
      %p110 = por %p108, %p109
      %p111 = scmp.ne.s32.totalorder %s100, %s103
      %p112 = scmp.eq.s32.totalorder %s20, 1
      %p113 = por %p111, %p112
      %p114 = scmp.ne.s32.totalorder %s103, %s104
      %p115 = scmp.eq.s32.totalorder %s20, 0
      %p116 = por %p114, %p115
      %p117 = scmp.ne.s32.totalorder %s103, %s104
      %p118 = scmp.eq.s32.totalorder %s21, 1
      %p119 = por %p117, %p118
      %p121 = scmp.ne.s32.totalorder %s104, %s120
      %p122 = scmp.eq.s32.totalorder %s21, 0
      %p123 = por %p121, %p122
      %s124 = ssub.s32 %s22, %s41
      %s125 = ssub.s32 %s23, %s37
      %s126 = sor.u32 %s124, %s125
      %p127 = scmp.eq.s32.totalorder %s126, 0
      %s129 = sadd.s32 %s128, 1
      %s130 = scalar_select %p127, %s128, %s129
      %p133 = pneg %p127
      %p134 = scmp.eq.s32.totalorder %s15, 1
      %p135 = por %p133, %p134
      %p136 = scmp.ne.s32.totalorder %s128, %s131
      %p137 = scmp.eq.s32.totalorder %s15, 0
      %p138 = por %p136, %p137
      %p139 = scmp.ne.s32.totalorder %s128, %s131
      %p140 = scmp.eq.s32.totalorder %s20, 1
      %p141 = por %p139, %p140
      %p142 = scmp.ne.s32.totalorder %s131, %s132
      %p143 = scmp.eq.s32.totalorder %s20, 0
      %p144 = por %p142, %p143
      %p145 = scmp.ne.s32.totalorder %s131, %s132
      %p146 = scmp.eq.s32.totalorder %s21, 1
      %p147 = por %p145, %p146
      %p149 = scmp.ne.s32.totalorder %s132, %s148
      %p150 = scmp.eq.s32.totalorder %s21, 0
      %p151 = por %p149, %p150
      %p152 = scmp.le.s32.totalorder 1, %s15
      %p153 = scmp.lt.s32.totalorder %s15, 3
      %p154 = pnand %p152, %p153
      %p155 = pneg %p154
      // Predicated region
      $region9: #{tpu_custom_call.1} parent=5 // pred_check
        _
      $region10: #{tpu_custom_call.1} parent=5 // pred_check_branch
        %157 = sbr.rel (%p154) target = $region12
      $region11: #{tpu_custom_call.1} parent=5 // pred_region
        %s158 = ssub.s32 %s15, 1
        // Predicated region
        $region13: #{tpu_custom_call.1} parent=11 // pred_check
          %p159 = pneg %p62
        $region14: #{tpu_custom_call.1} parent=11 // pred_check_branch
          %161 = sbr.rel (%p159) target = $region16
        $region15: #{tpu_custom_call.1} parent=11 // pred_region
          %s162 = smul.u32 4, %s27
          %p163 = scmp.lt.s32.totalorder %s162, 3
          %s164 = scalar_select %p163, %s162, 3
          %p165 = scmp.lt.s32.totalorder %s25, 0
          %s166 = scalar_select %p165, %s25, 0
          %s167 = sadd.s32 %s166, %s164
          %s168 = smul.addr %s167, 8
          %s169 = scalar_lea.vmem %s0, %s168
          %s170 = smul.u32 4, %s27
        $region16: #{tpu_custom_call.1} parent=11 // pred_fallthru
          _
      $region12: #{tpu_custom_call.1} parent=5 // pred_fallthru
        _
      %p171 = scmp.lt.s32.totalorder %s15, 2
      // Predicated region
      $region17: #{tpu_custom_call.1} parent=5 // pred_check
        %p172 = pneg %p171
      $region18: #{tpu_custom_call.1} parent=5 // pred_check_branch
        %174 = sbr.rel (%p172) target = $region20
      $region19: #{tpu_custom_call.1} parent=5 // pred_region
        // Predicated region
        $region21: #{tpu_custom_call.1} parent=19 // pred_check
          %p175 = pneg %p84
        $region22: #{tpu_custom_call.1} parent=19 // pred_check_branch
          %177 = sbr.rel (%p175) target = $region24
        $region23: #{tpu_custom_call.1} parent=19 // pred_region
          %s178 = sand.u32 %s74, 1
          %s179 = scalar_lea.sflag [#allocation5], %s178
          %s180 = sand.u32 %s74, 1
          %s181 = smul.addr %s180, 32
          %s182 = scalar_lea.vmem [#allocation4], %s181
          %s183 = smul.u32 4, %s24
          %s185 = ssub.s32 512, 512
          %186 = vsyncadd %s179, %s185
          %s187 = smul.addr %s183, 2
          %s188 = sadd.s32 %s23, %s187
          %s189 = smul.addr %s188, 128
          %s190 = scalar_lea.hbm %s1, %s189
          %s191 = sshll.u32 %s182, 4
          %s192 = int_to_ptr.vmem [resolvable:$true] %s191
          %197 = dma.hbm_to_vmem [thread:$0]  %s190, 512, %s192, %s179, 256, 128, 8
        $region24: #{tpu_custom_call.1} parent=19 // pred_fallthru
          _
        // Predicated region
        $region25: #{tpu_custom_call.1} parent=19 // pred_check
          %p198 = pneg %p110
        $region26: #{tpu_custom_call.1} parent=19 // pred_check_branch
          %200 = sbr.rel (%p198) target = $region28
        $region27: #{tpu_custom_call.1} parent=19 // pred_region
          %p201 = scmp.lt.s32.totalorder %s23, 1
          %s202 = scalar_select %p201, %s23, 1
          %s203 = scalar_lea.vmem %s2, %s202
        $region28: #{tpu_custom_call.1} parent=19 // pred_fallthru
          _
      $region20: #{tpu_custom_call.1} parent=5 // pred_fallthru
        _
      %p204 = scmp.le.s32.totalorder 1, %s15
      %p205 = scmp.lt.s32.totalorder %s15, 3
      %p206 = pnand %p204, %p205
      %p207 = pneg %p206
      // Predicated region
      $region29: #{tpu_custom_call.1} parent=5 // pred_check
        _
      $region30: #{tpu_custom_call.1} parent=5 // pred_check_branch
        %209 = sbr.rel (%p206) target = $region32
      $region31: #{tpu_custom_call.1} parent=5 // pred_region
        %s210 = ssub.s32 %s15, 1
        %s211 = sand.u32 %s77, 1
        %s212 = scalar_lea.sflag [#allocation5], %s211
        %s213 = sand.u32 %s77, 1
        %s214 = smul.addr %s213, 32
        %s215 = scalar_lea.vmem [#allocation4], %s214
        // Predicated region
        $region33: #{tpu_custom_call.1} parent=31 // pred_check
          %p216 = pneg %p90
        $region34: #{tpu_custom_call.1} parent=31 // pred_check_branch
          %218 = sbr.rel (%p216) target = $region36
        $region35: #{tpu_custom_call.1} parent=31 // pred_region
          %219 = dma.done %s212, 512
        $region36: #{tpu_custom_call.1} parent=31 // pred_fallthru
          _
        %s220 = smul.u32 4, %s27
        %p221 = scmp.lt.s32.totalorder %s220, 3
        %s222 = scalar_select %p221, %s220, 3
        %p223 = scmp.lt.s32.totalorder %s25, 0
        %s224 = scalar_select %p223, %s25, 0
        %s225 = sadd.s32 %s224, %s222
        %s226 = smul.addr %s225, 8
        %s227 = scalar_lea.vmem %s0, %s226
        %p228 = pneg %p62
        %p229 = pneg %p59
        %s230 = sand.u32 %s77, 1
        %s231 = scalar_lea.sflag [#allocation5], %s230
        %s232 = sand.u32 %s77, 1
        %s233 = smul.addr %s232, 32
        %s234 = scalar_lea.vmem [#allocation4], %s233
        %p235 = pneg %p90
        %p236 = pneg %p87
        %p237 = scmp.lt.s32.totalorder %s26, 1
        %s238 = scalar_select %p237, %s26, 1
        %s239 = scalar_lea.vmem %s2, %s238
        %p240 = pneg %p116
        %p241 = pneg %p113
        %p242 = pneg %p144
        %p243 = pneg %p141
        %s244 = sand.u32 %s131, 1
        %s245 = scalar_lea.sflag [#allocation6], %s244
        %s246 = sand.u32 %s131, 1
        %s247 = smul.addr %s246, 8
        %s248 = scalar_lea.vmem [#allocation7], %s247
        %s249 = smul.u32 4, %s27
        %p250 = scmp.lt.s32.totalorder %s249, 3
        %s251 = scalar_select %p250, %s249, 3
        %p252 = scmp.lt.s32.totalorder %s25, 0
        %s253 = scalar_select %p252, %s25, 0
        %s254 = sadd.s32 %s253, %s251
        %s255 = smul.addr %s254, 8
        %s256 = scalar_lea.vmem %s0, %s255
        %s257 = smul.u32 4, %s27
        %s258 = smul.u32 4, %s27
        %p259 = scmp.lt.s32.totalorder %s26, 1
        %s260 = scalar_select %p259, %s26, 1
        %s261 = scalar_lea.vmem %s2, %s260
        %p262 = scmp.eq.s32.totalorder %s27, 0
        // Predicated region
        $region37: #{tpu_custom_call.1} parent=31 // pred_check
          %p263 = pneg %p262
        $region38: #{tpu_custom_call.1} parent=31 // pred_check_branch
          %265 = sbr.rel (%p263) target = $region40
        $region39: #{tpu_custom_call.1} parent=31 // pred_region
          %266 = vst [vmem:[#allocation2] sm:$0xff] 0.0
          %267 = vst [vmem:[#allocation3] sm:$0xff] 0.0
        $region40: #{tpu_custom_call.1} parent=31 // pred_fallthru
          _
        %v268 = vld [vmem:[#allocation2] sm:$0xff]
        %v269 = vld [vmem:[%s256] sm:$0x1]
        %v270 = vld [vmem:[%s215] sm:$0x1]
        %v271 = vlaneseq
        %v272 = vshrl.u32 %v271, 7
        %v273 = vsub.s32 0, %v272
        %v274 = vrot.slane %v269, %v273
        %276 = vbcast.lane.b32.xlu0 %v274, 256
        %v277 = vpop.permute.xlu0 %276
        %v278 = vlaneseq
        %v279 = vshrl.u32 %v278, 7
        %v280 = vsub.s32 0, %v279
        %v281 = vrot.slane %v270, %v280
        %v282 = vsub.f32 %v277, %v281
        %v283 = vmul.f32 %v282, %v282
        %v284 = vmax.f32 %v268, %v283
        %v285 = vld [vmem:[%s256 + $0x1] sm:$0x1]
        %v286 = vld [vmem:[%s215 + $0x1] sm:$0x1]
        %v287 = vlaneseq
        %v288 = vshrl.u32 %v287, 7
        %v289 = vsub.s32 0, %v288
        %v290 = vrot.slane %v285, %v289
        %292 = vbcast.lane.b32.xlu0 %v290, 256
        %v293 = vpop.permute.xlu0 %292
        %v294 = vlaneseq
        %v295 = vshrl.u32 %v294, 7
        %v296 = vsub.s32 0, %v295
        %v297 = vrot.slane %v286, %v296
        %v298 = vsub.f32 %v293, %v297
        %v299 = vmul.f32 %v298, %v298
        %v300 = vmax.f32 %v284, %v299
        %v301 = vld [vmem:[%s256 + $0x2] sm:$0x1]
        %v302 = vld [vmem:[%s215 + $0x2] sm:$0x1]
        %v303 = vlaneseq
        %v304 = vshrl.u32 %v303, 7
        %v305 = vsub.s32 0, %v304
        %v306 = vrot.slane %v301, %v305
        %308 = vbcast.lane.b32.xlu0 %v306, 256
        %v309 = vpop.permute.xlu0 %308
        %v310 = vlaneseq
        %v311 = vshrl.u32 %v310, 7
        %v312 = vsub.s32 0, %v311
        %v313 = vrot.slane %v302, %v312
        %v314 = vsub.f32 %v309, %v313
        %v315 = vmul.f32 %v314, %v314
        %v316 = vmax.f32 %v300, %v315
        %v317 = vld [vmem:[%s256 + $0x3] sm:$0x1]
        %v318 = vld [vmem:[%s215 + $0x3] sm:$0x1]
        %v319 = vlaneseq
        %v320 = vshrl.u32 %v319, 7
        %v321 = vsub.s32 0, %v320
        %v322 = vrot.slane %v317, %v321
        %324 = vbcast.lane.b32.xlu0 %v322, 256
        %v325 = vpop.permute.xlu0 %324
        %v326 = vlaneseq
        %v327 = vshrl.u32 %v326, 7
        %v328 = vsub.s32 0, %v327
        %v329 = vrot.slane %v318, %v328
        %v330 = vsub.f32 %v325, %v329
        %v331 = vmul.f32 %v330, %v330
        %v332 = vmax.f32 %v316, %v331
        %v333 = vld [vmem:[%s256 + $0x4] sm:$0x1]
        %v334 = vld [vmem:[%s215 + $0x4] sm:$0x1]
        %v335 = vlaneseq
        %v336 = vshrl.u32 %v335, 7
        %v337 = vsub.s32 0, %v336
        %v338 = vrot.slane %v333, %v337
        %340 = vbcast.lane.b32.xlu0 %v338, 256
        %v341 = vpop.permute.xlu0 %340
        %v342 = vlaneseq
        %v343 = vshrl.u32 %v342, 7
        %v344 = vsub.s32 0, %v343
        %v345 = vrot.slane %v334, %v344
        %v346 = vsub.f32 %v341, %v345
        %v347 = vmul.f32 %v346, %v346
        %v348 = vmax.f32 %v332, %v347
        %v349 = vld [vmem:[%s256 + $0x5] sm:$0x1]
        %v350 = vld [vmem:[%s215 + $0x5] sm:$0x1]
        %v351 = vlaneseq
        %v352 = vshrl.u32 %v351, 7
        %v353 = vsub.s32 0, %v352
        %v354 = vrot.slane %v349, %v353
        %356 = vbcast.lane.b32.xlu0 %v354, 256
        %v357 = vpop.permute.xlu0 %356
        %v358 = vlaneseq
        %v359 = vshrl.u32 %v358, 7
        %v360 = vsub.s32 0, %v359
        %v361 = vrot.slane %v350, %v360
        %v362 = vsub.f32 %v357, %v361
        %v363 = vmul.f32 %v362, %v362
        %v364 = vmax.f32 %v348, %v363
        %v365 = vld [vmem:[%s256 + $0x6] sm:$0x1]
        %v366 = vld [vmem:[%s215 + $0x6] sm:$0x1]
        %v367 = vlaneseq
        %v368 = vshrl.u32 %v367, 7
        %v369 = vsub.s32 0, %v368
        %v370 = vrot.slane %v365, %v369
        %372 = vbcast.lane.b32.xlu0 %v370, 256
        %v373 = vpop.permute.xlu0 %372
        %v374 = vlaneseq
        %v375 = vshrl.u32 %v374, 7
        %v376 = vsub.s32 0, %v375
        %v377 = vrot.slane %v366, %v376
        %v378 = vsub.f32 %v373, %v377
        %v379 = vmul.f32 %v378, %v378
        %v380 = vmax.f32 %v364, %v379
        %v381 = vld [vmem:[%s256 + $0x7] sm:$0x1]
        %v382 = vld [vmem:[%s215 + $0x7] sm:$0x1]
        %v383 = vlaneseq
        %v384 = vshrl.u32 %v383, 7
        %v385 = vsub.s32 0, %v384
        %v386 = vrot.slane %v381, %v385
        %388 = vbcast.lane.b32.xlu0 %v386, 256
        %v389 = vpop.permute.xlu0 %388
        %v390 = vlaneseq
        %v391 = vshrl.u32 %v390, 7
        %v392 = vsub.s32 0, %v391
        %v393 = vrot.slane %v382, %v392
        %v394 = vsub.f32 %v389, %v393
        %v395 = vmul.f32 %v394, %v394
        %v396 = vmax.f32 %v380, %v395
        %v397 = vld [vmem:[%s256 + $0x8] sm:$0x1]
        %v398 = vld [vmem:[%s215 + $0x8] sm:$0x1]
        %v399 = vlaneseq
        %v400 = vshrl.u32 %v399, 7
        %v401 = vsub.s32 0, %v400
        %v402 = vrot.slane %v397, %v401
        %404 = vbcast.lane.b32.xlu0 %v402, 256
        %v405 = vpop.permute.xlu0 %404
        %v406 = vlaneseq
        %v407 = vshrl.u32 %v406, 7
        %v408 = vsub.s32 0, %v407
        %v409 = vrot.slane %v398, %v408
        %v410 = vsub.f32 %v405, %v409
        %v411 = vmul.f32 %v410, %v410
        %v412 = vmax.f32 %v396, %v411
        %v413 = vld [vmem:[%s256 + $0x9] sm:$0x1]
        %v414 = vld [vmem:[%s215 + $0x9] sm:$0x1]
        %v415 = vlaneseq
        %v416 = vshrl.u32 %v415, 7
        %v417 = vsub.s32 0, %v416
        %v418 = vrot.slane %v413, %v417
        %420 = vbcast.lane.b32.xlu0 %v418, 256
        %v421 = vpop.permute.xlu0 %420
        %v422 = vlaneseq
        %v423 = vshrl.u32 %v422, 7
        %v424 = vsub.s32 0, %v423
        %v425 = vrot.slane %v414, %v424
        %v426 = vsub.f32 %v421, %v425
        %v427 = vmul.f32 %v426, %v426
        %v428 = vmax.f32 %v412, %v427
        %v429 = vld [vmem:[%s256 + $0xa] sm:$0x1]
        %v430 = vld [vmem:[%s215 + $0xa] sm:$0x1]
        %v431 = vlaneseq
        %v432 = vshrl.u32 %v431, 7
        %v433 = vsub.s32 0, %v432
        %v434 = vrot.slane %v429, %v433
        %436 = vbcast.lane.b32.xlu0 %v434, 256
        %v437 = vpop.permute.xlu0 %436
        %v438 = vlaneseq
        %v439 = vshrl.u32 %v438, 7
        %v440 = vsub.s32 0, %v439
        %v441 = vrot.slane %v430, %v440
        %v442 = vsub.f32 %v437, %v441
        %v443 = vmul.f32 %v442, %v442
        %v444 = vmax.f32 %v428, %v443
        %v445 = vld [vmem:[%s256 + $0xb] sm:$0x1]
        %v446 = vld [vmem:[%s215 + $0xb] sm:$0x1]
        %v447 = vlaneseq
        %v448 = vshrl.u32 %v447, 7
        %v449 = vsub.s32 0, %v448
        %v450 = vrot.slane %v445, %v449
        %452 = vbcast.lane.b32.xlu0 %v450, 256
        %v453 = vpop.permute.xlu0 %452
        %v454 = vlaneseq
        %v455 = vshrl.u32 %v454, 7
        %v456 = vsub.s32 0, %v455
        %v457 = vrot.slane %v446, %v456
        %v458 = vsub.f32 %v453, %v457
        %v459 = vmul.f32 %v458, %v458
        %v460 = vmax.f32 %v444, %v459
        %v461 = vld [vmem:[%s256 + $0xc] sm:$0x1]
        %v462 = vld [vmem:[%s215 + $0xc] sm:$0x1]
        %v463 = vlaneseq
        %v464 = vshrl.u32 %v463, 7
        %v465 = vsub.s32 0, %v464
        %v466 = vrot.slane %v461, %v465
        %468 = vbcast.lane.b32.xlu0 %v466, 256
        %v469 = vpop.permute.xlu0 %468
        %v470 = vlaneseq
        %v471 = vshrl.u32 %v470, 7
        %v472 = vsub.s32 0, %v471
        %v473 = vrot.slane %v462, %v472
        %v474 = vsub.f32 %v469, %v473
        %v475 = vmul.f32 %v474, %v474
        %v476 = vmax.f32 %v460, %v475
        %v477 = vld [vmem:[%s256 + $0xd] sm:$0x1]
        %v478 = vld [vmem:[%s215 + $0xd] sm:$0x1]
        %v479 = vlaneseq
        %v480 = vshrl.u32 %v479, 7
        %v481 = vsub.s32 0, %v480
        %v482 = vrot.slane %v477, %v481
        %484 = vbcast.lane.b32.xlu0 %v482, 256
        %v485 = vpop.permute.xlu0 %484
        %v486 = vlaneseq
        %v487 = vshrl.u32 %v486, 7
        %v488 = vsub.s32 0, %v487
        %v489 = vrot.slane %v478, %v488
        %v490 = vsub.f32 %v485, %v489
        %v491 = vmul.f32 %v490, %v490
        %v492 = vmax.f32 %v476, %v491
        %v493 = vld [vmem:[%s256 + $0xe] sm:$0x1]
        %v494 = vld [vmem:[%s215 + $0xe] sm:$0x1]
        %v495 = vlaneseq
        %v496 = vshrl.u32 %v495, 7
        %v497 = vsub.s32 0, %v496
        %v498 = vrot.slane %v493, %v497
        %500 = vbcast.lane.b32.xlu0 %v498, 256
        %v501 = vpop.permute.xlu0 %500
        %v502 = vlaneseq
        %v503 = vshrl.u32 %v502, 7
        %v504 = vsub.s32 0, %v503
        %v505 = vrot.slane %v494, %v504
        %v506 = vsub.f32 %v501, %v505
        %v507 = vmul.f32 %v506, %v506
        %v508 = vmax.f32 %v492, %v507
        %v509 = vld [vmem:[%s256 + $0xf] sm:$0x1]
        %v510 = vld [vmem:[%s215 + $0xf] sm:$0x1]
        %v511 = vlaneseq
        %v512 = vshrl.u32 %v511, 7
        %v513 = vsub.s32 0, %v512
        %v514 = vrot.slane %v509, %v513
        %516 = vbcast.lane.b32.xlu0 %v514, 256
        %v517 = vpop.permute.xlu0 %516
        %v518 = vlaneseq
        %v519 = vshrl.u32 %v518, 7
        %v520 = vsub.s32 0, %v519
        %v521 = vrot.slane %v510, %v520
        %v522 = vsub.f32 %v517, %v521
        %v523 = vmul.f32 %v522, %v522
        %v524 = vmax.f32 %v508, %v523
        %v525 = vld [vmem:[%s256 + $0x10] sm:$0x1]
        %v526 = vld [vmem:[%s215 + $0x10] sm:$0x1]
        %v527 = vlaneseq
        %v528 = vshrl.u32 %v527, 7
        %v529 = vsub.s32 0, %v528
        %v530 = vrot.slane %v525, %v529
        %532 = vbcast.lane.b32.xlu0 %v530, 256
        %v533 = vpop.permute.xlu0 %532
        %v534 = vlaneseq
        %v535 = vshrl.u32 %v534, 7
        %v536 = vsub.s32 0, %v535
        %v537 = vrot.slane %v526, %v536
        %v538 = vsub.f32 %v533, %v537
        %v539 = vmul.f32 %v538, %v538
        %v540 = vmax.f32 %v524, %v539
        %v541 = vld [vmem:[%s256 + $0x11] sm:$0x1]
        %v542 = vld [vmem:[%s215 + $0x11] sm:$0x1]
        %v543 = vlaneseq
        %v544 = vshrl.u32 %v543, 7
        %v545 = vsub.s32 0, %v544
        %v546 = vrot.slane %v541, %v545
        %548 = vbcast.lane.b32.xlu0 %v546, 256
        %v549 = vpop.permute.xlu0 %548
        %v550 = vlaneseq
        %v551 = vshrl.u32 %v550, 7
        %v552 = vsub.s32 0, %v551
        %v553 = vrot.slane %v542, %v552
        %v554 = vsub.f32 %v549, %v553
        %v555 = vmul.f32 %v554, %v554
        %v556 = vmax.f32 %v540, %v555
        %v557 = vld [vmem:[%s256 + $0x12] sm:$0x1]
        %v558 = vld [vmem:[%s215 + $0x12] sm:$0x1]
        %v559 = vlaneseq
        %v560 = vshrl.u32 %v559, 7
        %v561 = vsub.s32 0, %v560
        %v562 = vrot.slane %v557, %v561
        %564 = vbcast.lane.b32.xlu0 %v562, 256
        %v565 = vpop.permute.xlu0 %564
        %v566 = vlaneseq
        %v567 = vshrl.u32 %v566, 7
        %v568 = vsub.s32 0, %v567
        %v569 = vrot.slane %v558, %v568
        %v570 = vsub.f32 %v565, %v569
        %v571 = vmul.f32 %v570, %v570
        %v572 = vmax.f32 %v556, %v571
        %v573 = vld [vmem:[%s256 + $0x13] sm:$0x1]
        %v574 = vld [vmem:[%s215 + $0x13] sm:$0x1]
        %v575 = vlaneseq
        %v576 = vshrl.u32 %v575, 7
        %v577 = vsub.s32 0, %v576
        %v578 = vrot.slane %v573, %v577
        %580 = vbcast.lane.b32.xlu0 %v578, 256
        %v581 = vpop.permute.xlu0 %580
        %v582 = vlaneseq
        %v583 = vshrl.u32 %v582, 7
        %v584 = vsub.s32 0, %v583
        %v585 = vrot.slane %v574, %v584
        %v586 = vsub.f32 %v581, %v585
        %v587 = vmul.f32 %v586, %v586
        %v588 = vmax.f32 %v572, %v587
        %v589 = vld [vmem:[%s256 + $0x14] sm:$0x1]
        %v590 = vld [vmem:[%s215 + $0x14] sm:$0x1]
        %v591 = vlaneseq
        %v592 = vshrl.u32 %v591, 7
        %v593 = vsub.s32 0, %v592
        %v594 = vrot.slane %v589, %v593
        %596 = vbcast.lane.b32.xlu0 %v594, 256
        %v597 = vpop.permute.xlu0 %596
        %v598 = vlaneseq
        %v599 = vshrl.u32 %v598, 7
        %v600 = vsub.s32 0, %v599
        %v601 = vrot.slane %v590, %v600
        %v602 = vsub.f32 %v597, %v601
        %v603 = vmul.f32 %v602, %v602
        %v604 = vmax.f32 %v588, %v603
        %v605 = vld [vmem:[%s256 + $0x15] sm:$0x1]
        %v606 = vld [vmem:[%s215 + $0x15] sm:$0x1]
        %v607 = vlaneseq
        %v608 = vshrl.u32 %v607, 7
        %v609 = vsub.s32 0, %v608
        %v610 = vrot.slane %v605, %v609
        %612 = vbcast.lane.b32.xlu0 %v610, 256
        %v613 = vpop.permute.xlu0 %612
        %v614 = vlaneseq
        %v615 = vshrl.u32 %v614, 7
        %v616 = vsub.s32 0, %v615
        %v617 = vrot.slane %v606, %v616
        %v618 = vsub.f32 %v613, %v617
        %v619 = vmul.f32 %v618, %v618
        %v620 = vmax.f32 %v604, %v619
        %v621 = vld [vmem:[%s256 + $0x16] sm:$0x1]
        %v622 = vld [vmem:[%s215 + $0x16] sm:$0x1]
        %v623 = vlaneseq
        %v624 = vshrl.u32 %v623, 7
        %v625 = vsub.s32 0, %v624
        %v626 = vrot.slane %v621, %v625
        %628 = vbcast.lane.b32.xlu0 %v626, 256
        %v629 = vpop.permute.xlu0 %628
        %v630 = vlaneseq
        %v631 = vshrl.u32 %v630, 7
        %v632 = vsub.s32 0, %v631
        %v633 = vrot.slane %v622, %v632
        %v634 = vsub.f32 %v629, %v633
        %v635 = vmul.f32 %v634, %v634
        %v636 = vmax.f32 %v620, %v635
        %v637 = vld [vmem:[%s256 + $0x17] sm:$0x1]
        %v638 = vld [vmem:[%s215 + $0x17] sm:$0x1]
        %v639 = vlaneseq
        %v640 = vshrl.u32 %v639, 7
        %v641 = vsub.s32 0, %v640
        %v642 = vrot.slane %v637, %v641
        %644 = vbcast.lane.b32.xlu0 %v642, 256
        %v645 = vpop.permute.xlu0 %644
        %v646 = vlaneseq
        %v647 = vshrl.u32 %v646, 7
        %v648 = vsub.s32 0, %v647
        %v649 = vrot.slane %v638, %v648
        %v650 = vsub.f32 %v645, %v649
        %v651 = vmul.f32 %v650, %v650
        %v652 = vmax.f32 %v636, %v651
        %v653 = vld [vmem:[%s256 + $0x18] sm:$0x1]
        %v654 = vld [vmem:[%s215 + $0x18] sm:$0x1]
        %v655 = vlaneseq
        %v656 = vshrl.u32 %v655, 7
        %v657 = vsub.s32 0, %v656
        %v658 = vrot.slane %v653, %v657
        %660 = vbcast.lane.b32.xlu0 %v658, 256
        %v661 = vpop.permute.xlu0 %660
        %v662 = vlaneseq
        %v663 = vshrl.u32 %v662, 7
        %v664 = vsub.s32 0, %v663
        %v665 = vrot.slane %v654, %v664
        %v666 = vsub.f32 %v661, %v665
        %v667 = vmul.f32 %v666, %v666
        %v668 = vmax.f32 %v652, %v667
        %v669 = vld [vmem:[%s256 + $0x19] sm:$0x1]
        %v670 = vld [vmem:[%s215 + $0x19] sm:$0x1]
        %v671 = vlaneseq
        %v672 = vshrl.u32 %v671, 7
        %v673 = vsub.s32 0, %v672
        %v674 = vrot.slane %v669, %v673
        %676 = vbcast.lane.b32.xlu0 %v674, 256
        %v677 = vpop.permute.xlu0 %676
        %v678 = vlaneseq
        %v679 = vshrl.u32 %v678, 7
        %v680 = vsub.s32 0, %v679
        %v681 = vrot.slane %v670, %v680
        %v682 = vsub.f32 %v677, %v681
        %v683 = vmul.f32 %v682, %v682
        %v684 = vmax.f32 %v668, %v683
        %v685 = vld [vmem:[%s256 + $0x1a] sm:$0x1]
        %v686 = vld [vmem:[%s215 + $0x1a] sm:$0x1]
        %v687 = vlaneseq
        %v688 = vshrl.u32 %v687, 7
        %v689 = vsub.s32 0, %v688
        %v690 = vrot.slane %v685, %v689
        %692 = vbcast.lane.b32.xlu0 %v690, 256
        %v693 = vpop.permute.xlu0 %692
        %v694 = vlaneseq
        %v695 = vshrl.u32 %v694, 7
        %v696 = vsub.s32 0, %v695
        %v697 = vrot.slane %v686, %v696
        %v698 = vsub.f32 %v693, %v697
        %v699 = vmul.f32 %v698, %v698
        %v700 = vmax.f32 %v684, %v699
        %v701 = vld [vmem:[%s256 + $0x1b] sm:$0x1]
        %v702 = vld [vmem:[%s215 + $0x1b] sm:$0x1]
        %v703 = vlaneseq
        %v704 = vshrl.u32 %v703, 7
        %v705 = vsub.s32 0, %v704
        %v706 = vrot.slane %v701, %v705
        %708 = vbcast.lane.b32.xlu0 %v706, 256
        %v709 = vpop.permute.xlu0 %708
        %v710 = vlaneseq
        %v711 = vshrl.u32 %v710, 7
        %v712 = vsub.s32 0, %v711
        %v713 = vrot.slane %v702, %v712
        %v714 = vsub.f32 %v709, %v713
        %v715 = vmul.f32 %v714, %v714
        %v716 = vmax.f32 %v700, %v715
        %v717 = vld [vmem:[%s256 + $0x1c] sm:$0x1]
        %v718 = vld [vmem:[%s215 + $0x1c] sm:$0x1]
        %v719 = vlaneseq
        %v720 = vshrl.u32 %v719, 7
        %v721 = vsub.s32 0, %v720
        %v722 = vrot.slane %v717, %v721
        %724 = vbcast.lane.b32.xlu0 %v722, 256
        %v725 = vpop.permute.xlu0 %724
        %v726 = vlaneseq
        %v727 = vshrl.u32 %v726, 7
        %v728 = vsub.s32 0, %v727
        %v729 = vrot.slane %v718, %v728
        %v730 = vsub.f32 %v725, %v729
        %v731 = vmul.f32 %v730, %v730
        %v732 = vmax.f32 %v716, %v731
        %v733 = vld [vmem:[%s256 + $0x1d] sm:$0x1]
        %v734 = vld [vmem:[%s215 + $0x1d] sm:$0x1]
        %v735 = vlaneseq
        %v736 = vshrl.u32 %v735, 7
        %v737 = vsub.s32 0, %v736
        %v738 = vrot.slane %v733, %v737
        %740 = vbcast.lane.b32.xlu0 %v738, 256
        %v741 = vpop.permute.xlu0 %740
        %v742 = vlaneseq
        %v743 = vshrl.u32 %v742, 7
        %v744 = vsub.s32 0, %v743
        %v745 = vrot.slane %v734, %v744
        %v746 = vsub.f32 %v741, %v745
        %v747 = vmul.f32 %v746, %v746
        %v748 = vmax.f32 %v732, %v747
        %v749 = vld [vmem:[%s256 + $0x1e] sm:$0x1]
        %v750 = vld [vmem:[%s215 + $0x1e] sm:$0x1]
        %v751 = vlaneseq
        %v752 = vshrl.u32 %v751, 7
        %v753 = vsub.s32 0, %v752
        %v754 = vrot.slane %v749, %v753
        %756 = vbcast.lane.b32.xlu0 %v754, 256
        %v757 = vpop.permute.xlu0 %756
        %v758 = vlaneseq
        %v759 = vshrl.u32 %v758, 7
        %v760 = vsub.s32 0, %v759
        %v761 = vrot.slane %v750, %v760
        %v762 = vsub.f32 %v757, %v761
        %v763 = vmul.f32 %v762, %v762
        %v764 = vmax.f32 %v748, %v763
        %v765 = vld [vmem:[%s256 + $0x1f] sm:$0x1]
        %v766 = vld [vmem:[%s215 + $0x1f] sm:$0x1]
        %v767 = vlaneseq
        %v768 = vshrl.u32 %v767, 7
        %v769 = vsub.s32 0, %v768
        %v770 = vrot.slane %v765, %v769
        %772 = vbcast.lane.b32.xlu0 %v770, 256
        %v773 = vpop.permute.xlu0 %772
        %v774 = vlaneseq
        %v775 = vshrl.u32 %v774, 7
        %v776 = vsub.s32 0, %v775
        %v777 = vrot.slane %v766, %v776
        %v778 = vsub.f32 %v773, %v777
        %v779 = vmul.f32 %v778, %v778
        %v780 = vmax.f32 %v764, %v779
        %v781 = vmax.f32 %v780, 1e-30
        %v782 = vrcp.pop %v781
        %v783 = vmul.f32 1.0, %v782
        %v784 = vld [vmem:[#allocation3] sm:$0xff]
        %v785 = vmul.f32 %v268, %v783
        %v786 = vmul.f32 %v785, %v785
        %v787 = vmul.f32 %v786, %v786
        %v788 = vmul.f32 %v784, %v787
        %v789 = vmul.f32 %v283, %v783
        %v790 = vmul.f32 %v789, %v789
        %v791 = vmul.f32 %v790, %v790
        %v792 = vadd.f32 %v788, %v791
        %v793 = vmul.f32 %v299, %v783
        %v794 = vmul.f32 %v793, %v793
        %v795 = vmul.f32 %v794, %v794
        %v796 = vadd.f32 %v792, %v795
        %v797 = vmul.f32 %v315, %v783
        %v798 = vmul.f32 %v797, %v797
        %v799 = vmul.f32 %v798, %v798
        %v800 = vadd.f32 %v796, %v799
        %v801 = vmul.f32 %v331, %v783
        %v802 = vmul.f32 %v801, %v801
        %v803 = vmul.f32 %v802, %v802
        %v804 = vadd.f32 %v800, %v803
        %v805 = vmul.f32 %v347, %v783
        %v806 = vmul.f32 %v805, %v805
        %v807 = vmul.f32 %v806, %v806
        %v808 = vadd.f32 %v804, %v807
        %v809 = vmul.f32 %v363, %v783
        %v810 = vmul.f32 %v809, %v809
        %v811 = vmul.f32 %v810, %v810
        %v812 = vadd.f32 %v808, %v811
        %v813 = vmul.f32 %v379, %v783
        %v814 = vmul.f32 %v813, %v813
        %v815 = vmul.f32 %v814, %v814
        %v816 = vadd.f32 %v812, %v815
        %v817 = vmul.f32 %v395, %v783
        %v818 = vmul.f32 %v817, %v817
        %v819 = vmul.f32 %v818, %v818
        %v820 = vadd.f32 %v816, %v819
        %v821 = vmul.f32 %v411, %v783
        %v822 = vmul.f32 %v821, %v821
        %v823 = vmul.f32 %v822, %v822
        %v824 = vadd.f32 %v820, %v823
        %v825 = vmul.f32 %v427, %v783
        %v826 = vmul.f32 %v825, %v825
        %v827 = vmul.f32 %v826, %v826
        %v828 = vadd.f32 %v824, %v827
        %v829 = vmul.f32 %v443, %v783
        %v830 = vmul.f32 %v829, %v829
        %v831 = vmul.f32 %v830, %v830
        %v832 = vadd.f32 %v828, %v831
        %v833 = vmul.f32 %v459, %v783
        %v834 = vmul.f32 %v833, %v833
        %v835 = vmul.f32 %v834, %v834
        %v836 = vadd.f32 %v832, %v835
        %v837 = vmul.f32 %v475, %v783
        %v838 = vmul.f32 %v837, %v837
        %v839 = vmul.f32 %v838, %v838
        %v840 = vadd.f32 %v836, %v839
        %v841 = vmul.f32 %v491, %v783
        %v842 = vmul.f32 %v841, %v841
        %v843 = vmul.f32 %v842, %v842
        %v844 = vadd.f32 %v840, %v843
        %v845 = vmul.f32 %v507, %v783
        %v846 = vmul.f32 %v845, %v845
        %v847 = vmul.f32 %v846, %v846
        %v848 = vadd.f32 %v844, %v847
        %v849 = vmul.f32 %v523, %v783
        %v850 = vmul.f32 %v849, %v849
        %v851 = vmul.f32 %v850, %v850
        %v852 = vadd.f32 %v848, %v851
        %v853 = vmul.f32 %v539, %v783
        %v854 = vmul.f32 %v853, %v853
        %v855 = vmul.f32 %v854, %v854
        %v856 = vadd.f32 %v852, %v855
        %v857 = vmul.f32 %v555, %v783
        %v858 = vmul.f32 %v857, %v857
        %v859 = vmul.f32 %v858, %v858
        %v860 = vadd.f32 %v856, %v859
        %v861 = vmul.f32 %v571, %v783
        %v862 = vmul.f32 %v861, %v861
        %v863 = vmul.f32 %v862, %v862
        %v864 = vadd.f32 %v860, %v863
        %v865 = vmul.f32 %v587, %v783
        %v866 = vmul.f32 %v865, %v865
        %v867 = vmul.f32 %v866, %v866
        %v868 = vadd.f32 %v864, %v867
        %v869 = vmul.f32 %v603, %v783
        %v870 = vmul.f32 %v869, %v869
        %v871 = vmul.f32 %v870, %v870
        %v872 = vadd.f32 %v868, %v871
        %v873 = vmul.f32 %v619, %v783
        %v874 = vmul.f32 %v873, %v873
        %v875 = vmul.f32 %v874, %v874
        %v876 = vadd.f32 %v872, %v875
        %v877 = vmul.f32 %v635, %v783
        %v878 = vmul.f32 %v877, %v877
        %v879 = vmul.f32 %v878, %v878
        %v880 = vadd.f32 %v876, %v879
        %v881 = vmul.f32 %v651, %v783
        %v882 = vmul.f32 %v881, %v881
        %v883 = vmul.f32 %v882, %v882
        %v884 = vadd.f32 %v880, %v883
        %v885 = vmul.f32 %v667, %v783
        %v886 = vmul.f32 %v885, %v885
        %v887 = vmul.f32 %v886, %v886
        %v888 = vadd.f32 %v884, %v887
        %v889 = vmul.f32 %v683, %v783
        %v890 = vmul.f32 %v889, %v889
        %v891 = vmul.f32 %v890, %v890
        %v892 = vadd.f32 %v888, %v891
        %v893 = vmul.f32 %v699, %v783
        %v894 = vmul.f32 %v893, %v893
        %v895 = vmul.f32 %v894, %v894
        %v896 = vadd.f32 %v892, %v895
        %v897 = vmul.f32 %v715, %v783
        %v898 = vmul.f32 %v897, %v897
        %v899 = vmul.f32 %v898, %v898
        %v900 = vadd.f32 %v896, %v899
        %v901 = vmul.f32 %v731, %v783
        %v902 = vmul.f32 %v901, %v901
        %v903 = vmul.f32 %v902, %v902
        %v904 = vadd.f32 %v900, %v903
        %v905 = vmul.f32 %v747, %v783
        %v906 = vmul.f32 %v905, %v905
        %v907 = vmul.f32 %v906, %v906
        %v908 = vadd.f32 %v904, %v907
        %v909 = vmul.f32 %v763, %v783
        %v910 = vmul.f32 %v909, %v909
        %v911 = vmul.f32 %v910, %v910
        %v912 = vadd.f32 %v908, %v911
        %v913 = vmul.f32 %v779, %v783
        %v914 = vmul.f32 %v913, %v913
        %v915 = vmul.f32 %v914, %v914
        %v916 = vadd.f32 %v912, %v915
        %917 = vst [vmem:[#allocation2] sm:$0xff] %v780
        %918 = vst [vmem:[#allocation3] sm:$0xff] %v916
        // Predicated region
        $region41: #{tpu_custom_call.1} parent=31 // pred_check
          %p919 = pneg %p262
        $region42: #{tpu_custom_call.1} parent=31 // pred_check_branch
          %921 = sbr.rel (%p919) target = $region44
        $region43: #{tpu_custom_call.1} parent=31 // pred_region
          %v922 = vrsqrt.pop %v916
          %v923 = vmul.f32 %v916, %v922
          %vm924 = vcmp.eq.f32.partialorder %v916, inf
          %v925 = vsel %vm924, %v916, %v923
          %vm926 = vcmp.eq.f32.partialorder %v916, 0.0
          %v927 = vand.u32 %v916, 2147483648
          %v928 = vsel %vm926, %v927, %v925
          %v929 = vrsqrt.pop %v928
          %v930 = vmul.f32 %v928, %v929
          %vm931 = vcmp.eq.f32.partialorder %v928, inf
          %v932 = vsel %vm931, %v928, %v930
          %vm933 = vcmp.eq.f32.partialorder %v928, 0.0
          %v934 = vand.u32 %v928, 2147483648
          %v935 = vsel %vm933, %v934, %v932
          %v936 = vrsqrt.pop %v935
          %v937 = vmul.f32 %v935, %v936
          %vm938 = vcmp.eq.f32.partialorder %v935, inf
          %v939 = vsel %vm938, %v935, %v937
          %vm940 = vcmp.eq.f32.partialorder %v935, 0.0
          %v941 = vand.u32 %v935, 2147483648
          %v942 = vsel %vm940, %v941, %v939
          %v943 = vrsqrt.pop %v780
          %v944 = vmul.f32 %v780, %v943
          %vm945 = vcmp.eq.f32.partialorder %v780, inf
          %v946 = vsel %vm945, %v780, %v944
          %vm947 = vcmp.eq.f32.partialorder %v780, 0.0
          %v948 = vand.u32 %v780, 2147483648
          %v949 = vsel %vm947, %v948, %v946
          %v950 = vmul.f32 %v949, %v942
          %v951 = vld [vmem:[%s261] sm:$0x1]
          %v953 = vlaneseq
          %v954 = vshrl.u32 %v953, 7
          %v955 = vsub.s32 0, %v954
          %v956 = vrot.slane %v951, %v955
          %v958 = vadd.f32 %v950, %v956
          %959 = vst [vmem:[%s248] sm:$0xff] %v958
        $region44: #{tpu_custom_call.1} parent=31 // pred_fallthru
          _
        %s960 = sand.u32 %s131, 1
        %s961 = scalar_lea.sflag [#allocation6], %s960
        %s962 = sand.u32 %s131, 1
        %s963 = smul.addr %s962, 8
        %s964 = scalar_lea.vmem [#allocation7], %s963
        // Predicated region
        $region45: #{tpu_custom_call.1} parent=31 // pred_check
          %p965 = pneg %p141
        $region46: #{tpu_custom_call.1} parent=31 // pred_check_branch
          %967 = sbr.rel (%p965) target = $region48
        $region47: #{tpu_custom_call.1} parent=31 // pred_region
          %s969 = ssub.s32 128, 128
          %970 = vsyncadd %s961, %s969
          %s971 = smul.addr %s25, 2
          %s972 = sadd.s32 %s26, %s971
          %s973 = smul.addr %s972, 128
          %s974 = scalar_lea.hbm %s3, %s973
          %s976 = sshll.u32 %s964, 4
          %s977 = int_to_ptr.vmem [resolvable:$true] %s976
          %979 = dma.vmem_to_hbm [thread:$0]  %s977, 128, %s974, %s961
        $region48: #{tpu_custom_call.1} parent=31 // pred_fallthru
          _
      $region32: #{tpu_custom_call.1} parent=5 // pred_fallthru
        _
      %p980 = scmp.le.s32.totalorder 2, %s15
      // Predicated region
      $region49: #{tpu_custom_call.1} parent=5 // pred_check
        %p981 = pneg %p980
      $region50: #{tpu_custom_call.1} parent=5 // pred_check_branch
        %983 = sbr.rel (%p981) target = $region52
      $region51: #{tpu_custom_call.1} parent=5 // pred_region
        %s984 = ssub.s32 %s15, 2
        // Predicated region
        $region53: #{tpu_custom_call.1} parent=51 // pred_check
          %p985 = pneg %p147
        $region54: #{tpu_custom_call.1} parent=51 // pred_check_branch
          %987 = sbr.rel (%p985) target = $region56
        $region55: #{tpu_custom_call.1} parent=51 // pred_region
          %s988 = sand.u32 %s132, 1
          %s989 = scalar_lea.sflag [#allocation6], %s988
          %s990 = sand.u32 %s132, 1
          %s991 = smul.addr %s990, 8
          %s992 = scalar_lea.vmem [#allocation7], %s991
          %993 = dma.done %s989, 128
        $region56: #{tpu_custom_call.1} parent=51 // pred_fallthru
          _
      $region52: #{tpu_custom_call.1} parent=5 // pred_fallthru
        _
    $region6: #{tpu_custom_call.1} parent=1 // loop_footer
      %s19 = sadd.s32 1, %s15
    $region7: #{tpu_custom_call.1} parent=1 // loop_footer_branch
      %14 = sbr.rel target = $region3
    $region8: #{tpu_custom_call.1} parent=1 // loop_exit
      _
    %994 = vsyncpa [#allocation5], 1
    %s995 = scalar_lea.sflag [#allocation5], 1
    %996 = vsyncpa %s995, 1
    %997 = vsyncpa [#allocation6], 1
    %s998 = scalar_lea.sflag [#allocation6], 1
    %999 = vsyncpa %s998, 1

</llo_original>
